<compile_context>
chip_gen: v6e
topology: v6e:2x2x1
jax: 0.10.0
libtpu: 0.0.40
codegen_flags: <defaults>
</compile_context>

<pallas_src>
import math
import functools

import numpy as np
import jax
import jax.numpy as jnp
from jax import lax
from jax.experimental import pallas as pl
from jax.experimental.pallas import tpu as pltpu


# ----------------------------------------------------------------------------
# Fused kernel: BiLSTM recurrence + attention pooling
# ----------------------------------------------------------------------------
def _specific_fused_kernel(xp_ref,    # (S*B, 2V) paired input rows: [x[t,b] | x[S-1-t,b]]
                           wx_ref,    # (2V, 8H)  combined (block-diag, gate-permuted) input weights
                           wh_ref,    # (2H, 8H)  combined (block-diag, gate-permuted) recurrent weights
                           b_ref,     # (1, 8H)   combined biases (gate-permuted)
                           wa_ref,    # (2H, 2H)  attention Linear weight (pre-transposed)
                           ba_ref,    # (1, 2H)
                           v_ref,     # (1, 2H)   att_weight as a row vector
                           sel_ref,   # (B, S*B)  batch-segment selector (row r -> batch r % B)
                           out_ref,   # (B, 1, 2H)
                           h_scr):    # VMEM scratch (S*B, 2H), row = s*B + b
    SB = xp_ref.shape[0]
    H2 = wh_ref.shape[0]          # 2*H
    H = H2 // 2
    B = out_ref.shape[0]
    S = SB // B

    # ---- (1) input projection hoisted out of the recurrence: ONE wide matmul
    x_proj = (jnp.dot(xp_ref[...], wx_ref[...],
                      preferred_element_type=jnp.float32) + b_ref[...])      # (S*B, 8H)

    wh = wh_ref[...]                                                          # (2H, 8H)

    # ---- (2) fwd & bwd recurrences interleaved, fully unrolled (S is static)
    h_cat = jnp.zeros((B, H2), jnp.float32)   # [h_fwd | h_bwd]
    c_cat = jnp.zeros((B, H2), jnp.float32)   # [c_fwd | c_bwd]
    for t in range(S):
        gates = x_proj[t * B:(t + 1) * B, :] + jnp.dot(
            h_cat, wh, preferred_element_type=jnp.float32)                   # (B, 8H)
        # interleaved gate layout -> each gate is one contiguous (B, 2H) slice
        i = jax.nn.sigmoid(gates[:, 0 * H2:1 * H2])
        f = jax.nn.sigmoid(gates[:, 1 * H2:2 * H2])
        g = jnp.tanh(gates[:, 2 * H2:3 * H2])
        o = jax.nn.sigmoid(gates[:, 3 * H2:4 * H2])
        c_cat = f * c_cat + i * g
        h_cat = o * jnp.tanh(c_cat)
        # fwd hidden of step t belongs to position t, bwd hidden to position S-1-t
        h_scr[t * B:(t + 1) * B, 0:H] = h_cat[:, 0:H]
        h_scr[(S - 1 - t) * B:(S - t) * B, H:H2] = h_cat[:, H:H2]

    # ---- (3) attention fused in the same kernel (all batches at once)
    h = h_scr[...]                                                            # (S*B, 2H)
    u = jnp.tanh(jnp.dot(h, wa_ref[...],
                         preferred_element_type=jnp.float32) + ba_ref[...])   # (S*B, 2H)
    # score via VPU multiply + lane reduce (avoids an N=1 MXU matmul)
    scores = jnp.sum(u * v_ref[...], axis=-1, keepdims=True)                  # (S*B, 1)
    # global max shift is constant within each batch segment -> softmax unchanged
    e = jnp.exp(scores - jnp.max(scores, keepdims=True))                      # (S*B, 1)
    # per-batch segmented sum / weighted pool via a tiny selector matmul
    num = jnp.dot(sel_ref[...], e * h, preferred_element_type=jnp.float32)    # (B, 2H)
    den = jnp.dot(sel_ref[...], e, preferred_element_type=jnp.float32)        # (B, 1)
    pooled = num * pl.reciprocal(den, approx=True)                            # (B, 2H)
    out_ref[...] = pooled.reshape(B, 1, H2).astype(out_ref.dtype)


# ----------------------------------------------------------------------------
# Parameter init (deterministic, mirrors nn.LSTM / nn.Linear / torch.rand shapes)
# ----------------------------------------------------------------------------
def init_params(key, vec_len, hidden_dim):
    V, H = vec_len, hidden_dim
    ks = jax.random.split(key, 12)
    bl = 1.0 / math.sqrt(H)          # LSTM init bound
    ba = 1.0 / math.sqrt(2 * H)      # Linear(2H -> 2H) init bound

    def u(k, shape, bound):
        return jax.random.uniform(k, shape, jnp.float32, -bound, bound)

    return dict(
        wih_f=u(ks[0], (4 * H, V), bl), whh_f=u(ks[1], (4 * H, H), bl),
        bih_f=u(ks[2], (4 * H,), bl),   bhh_f=u(ks[3], (4 * H,), bl),
        wih_b=u(ks[4], (4 * H, V), bl), whh_b=u(ks[5], (4 * H, H), bl),
        bih_b=u(ks[6], (4 * H,), bl),   bhh_b=u(ks[7], (4 * H,), bl),
        att_weight=jax.random.uniform(ks[8], (2 * H, 1), jnp.float32),     # torch.rand
        attn_w=u(ks[9], (2 * H, 2 * H), ba),
        attn_b=u(ks[10], (2 * H,), ba),
    )


# ----------------------------------------------------------------------------
# Forward wrapper: tiny weight re-layout + single fused pallas_call
# ----------------------------------------------------------------------------
@jax.jit
def specific_forward(x, p):
    B, S, V = x.shape
    H = p["whh_f"].shape[1]
    H2, H4, H8 = 2 * H, 4 * H, 8 * H
    f32 = jnp.float32

    # gate-column permutation:
    #   natural combined layout [fwd: i,f,g,o | bwd: i,f,g,o]  ->
    #   interleaved layout     [i_f,i_b, f_f,f_b, g_f,g_b, o_f,o_b]
    perm = np.concatenate([np.arange(d * H4 + k * H, d * H4 + (k + 1) * H)
                           for k in range(4) for d in range(2)])

    zs_v = jnp.zeros((V, H4), f32)
    zs_h = jnp.zeros((H, H4), f32)
    # block-diagonal combined weights (fwd block top-left, bwd block bottom-right),
    # then permute columns into the interleaved gate layout.
    wx = jnp.concatenate([
        jnp.concatenate([p["wih_f"].T.astype(f32), zs_v], axis=1),
        jnp.concatenate([zs_v, p["wih_b"].T.astype(f32)], axis=1)], axis=0)[:, perm]   # (2V, 8H)
    wh = jnp.concatenate([
        jnp.concatenate([p["whh_f"].T.astype(f32), zs_h], axis=1),
        jnp.concatenate([zs_h, p["whh_b"].T.astype(f32)], axis=1)], axis=0)[:, perm]   # (2H, 8H)
    b = jnp.concatenate([p["bih_f"] + p["bhh_f"],
                         p["bih_b"] + p["bhh_b"]]).astype(f32)[perm].reshape(1, H8)    # (1, 8H)

    # paired time-major input: row t*B+b = [x[b, t, :] | x[b, S-1-t, :]], so one
    # matmul produces the fwd gate contributions for time t AND the bwd gate
    # contributions for time S-1-t on the same row.
    x_t = jnp.transpose(x, (1, 0, 2)).astype(f32)                 # (S, B, V)
    x_pair = jnp.concatenate([x_t, x_t[::-1]], axis=-1)           # (S, B, 2V)
    x_pair = x_pair.reshape(S * B, 2 * V)                         # (S*B, 2V)

    wa = p["attn_w"].T.astype(f32)                                # (2H, 2H)
    ba = p["attn_b"].astype(f32).reshape(1, H2)                   # (1, 2H)
    v_row = p["att_weight"].astype(f32).reshape(1, H2)            # (1, 2H)

    # batch-segment selector: sel[b, r] = 1 iff flat row r (= s*B + b) is batch b
    sel = (jnp.arange(S * B)[None, :] % B ==
           jnp.arange(B)[:, None]).astype(f32)                    # (B, S*B)

    out = pl.pallas_call(
        _specific_fused_kernel,
        out_shape=jax.ShapeDtypeStruct((B, 1, H2), f32),
        scratch_shapes=[pltpu.VMEM((S * B, H2), f32)],
    )(x_pair, wx, wh, b, wa, ba, v_row, sel)
    # TODO(synk): self.dropout(output) is identity in eval mode; training-mode
    # inplace dropout not implemented.
    return out


# ----------------------------------------------------------------------------
# Pure-JAX reference (same math, no Pallas) for correctness checking
# ----------------------------------------------------------------------------
def reference_forward(x, p):
    B, S, V = x.shape
    H = p["whh_f"].shape[1]

    def cell(x_t, h, c, wih, whh, b):
        gates = x_t @ wih.T + h @ whh.T + b
        i = jax.nn.sigmoid(gates[:, :H])
        f = jax.nn.sigmoid(gates[:, H:2 * H])
        g = jnp.tanh(gates[:, 2 * H:3 * H])
        o = jax.nn.sigmoid(gates[:, 3 * H:])
        c = f * c + i * g
        return o * jnp.tanh(c), c

    def run(xs, wih, whh, b):
        def step(carry, x_t):
            h, c = carry
            h, c = cell(x_t, h, c, wih, whh, b)
            return (h, c), h
        init = (jnp.zeros((B, H), jnp.float32), jnp.zeros((B, H), jnp.float32))
        _, hs = lax.scan(step, init, xs)
        return hs

    xs = jnp.transpose(x, (1, 0, 2))
    hf = run(xs, p["wih_f"], p["whh_f"], p["bih_f"] + p["bhh_f"])
    hb = run(xs[::-1], p["wih_b"], p["whh_b"], p["bih_b"] + p["bhh_b"])[::-1]
    h = jnp.transpose(jnp.concatenate([hf, hb], axis=-1), (1, 0, 2))   # (B, S, 2H)
    u = jnp.tanh(h @ p["attn_w"].T + p["attn_b"])
    s = u @ p["att_weight"]                                            # (B, S, 1)
    w = jax.nn.softmax(s, axis=1)
    return jnp.matmul(jnp.transpose(w, (0, 2, 1)), h)                  # (B, 1, 2H)


if __name__ == "__main__":
    # args: attention_dim (hidden_dim) = 32, vec_len = 32; batch = 2, seq = 8
    B, S, V, H = 2, 8, 32, 32
    key = jax.random.PRNGKey(0)
    k_x, k_p = jax.random.split(key)
    x = jax.random.normal(k_x, (B, S, V), jnp.float32)
    params = init_params(k_p, V, H)

    out = jax.block_until_ready(specific_forward(x, params))
    assert out.shape == (B, 1, 2 * H), out.shape

    ref = reference_forward(x, params)
    err = float(jnp.max(jnp.abs(out - ref)))
    # tolerance 1e-3 (vs 1e-4 before) solely to accommodate the approximate EUP
    # reciprocal used for the softmax normalization; everything else is exact f32.
    assert err < 1e-3, err

    print("KERNEL_OK")
</pallas_src>

<mosaic_0001>
module attributes {stable_mosaic.version = 11 : i64} {
  func.func @_specific_fused_kernel(%arg0: memref<16x64xf32, #tpu.memory_space<vmem>>, %arg1: memref<64x256xf32, #tpu.memory_space<vmem>>, %arg2: memref<64x256xf32, #tpu.memory_space<vmem>>, %arg3: memref<1x256xf32, #tpu.memory_space<vmem>>, %arg4: memref<64x64xf32, #tpu.memory_space<vmem>>, %arg5: memref<1x64xf32, #tpu.memory_space<vmem>>, %arg6: memref<1x64xf32, #tpu.memory_space<vmem>>, %arg7: memref<2x16xf32, #tpu.memory_space<vmem>>, %arg8: memref<2x1x64xf32, #tpu.memory_space<vmem>>, %arg9: memref<16x64xf32, #tpu.memory_space<vmem>>) attributes {dimension_semantics = [], scalar_prefetch = 0 : i64, scratch_operands = 1 : i64, tpu.core_type = #tpu.core_type<tc>} {
    %c0 = arith.constant 0 : index
    %c0_0 = arith.constant 0 : index
    %0 = vector.load %arg0[%c0, %c0_0] : memref<16x64xf32, #tpu.memory_space<vmem>>, vector<16x64xf32>
    %c0_1 = arith.constant 0 : index
    %c0_2 = arith.constant 0 : index
    %1 = vector.load %arg1[%c0_1, %c0_2] : memref<64x256xf32, #tpu.memory_space<vmem>>, vector<64x256xf32>
    %cst = arith.constant dense<0.000000e+00> : vector<16x256xf32>
    %2 = tpu.matmul %0, %1, %cst {dimension_numbers = #tpu.dot_dimension_numbers<[1], [0], [0], [1], [0, 0, 1, 1], [], []>} : vector<16x64xf32>, vector<64x256xf32>, vector<16x256xf32> -> vector<16x256xf32>
    %c0_3 = arith.constant 0 : index
    %c0_4 = arith.constant 0 : index
    %3 = vector.load %arg3[%c0_3, %c0_4] : memref<1x256xf32, #tpu.memory_space<vmem>>, vector<1x256xf32>
    %4 = vector.broadcast %3 : vector<1x256xf32> to vector<16x256xf32>
    %5 = arith.addf %2, %4 : vector<16x256xf32>
    %c0_5 = arith.constant 0 : index
    %c0_6 = arith.constant 0 : index
    %6 = vector.load %arg2[%c0_5, %c0_6] : memref<64x256xf32, #tpu.memory_space<vmem>>, vector<64x256xf32>
    %cst_7 = arith.constant 0.000000e+00 : f32
    %7 = vector.broadcast %cst_7 : f32 to vector<2x64xf32>
    %cst_8 = arith.constant 0.000000e+00 : f32
    %8 = vector.broadcast %cst_8 : f32 to vector<2x64xf32>
    %9 = vector.extract_strided_slice %5 {offsets = [0, 0], sizes = [2, 256], strides = [1, 1]} : vector<16x256xf32> to vector<2x256xf32>
    %cst_9 = arith.constant dense<0.000000e+00> : vector<2x256xf32>
    %10 = tpu.matmul %7, %6, %cst_9 {dimension_numbers = #tpu.dot_dimension_numbers<[1], [0], [0], [1], [0, 0, 1, 1], [], []>} : vector<2x64xf32>, vector<64x256xf32>, vector<2x256xf32> -> vector<2x256xf32>
    %11 = arith.addf %9, %10 : vector<2x256xf32>
    %12 = vector.extract_strided_slice %11 {offsets = [0, 0], sizes = [2, 64], strides = [1, 1]} : vector<2x256xf32> to vector<2x64xf32>
    %13 = arith.negf %12 : vector<2x64xf32>
    %14 = math.exp %13 : vector<2x64xf32>
    %cst_10 = arith.constant 1.000000e+00 : f32
    %15 = vector.broadcast %cst_10 : f32 to vector<2x64xf32>
    %16 = arith.addf %15, %14 : vector<2x64xf32>
    %17 = arith.divf %15, %16 : vector<2x64xf32>
    %18 = vector.extract_strided_slice %11 {offsets = [0, 64], sizes = [2, 64], strides = [1, 1]} : vector<2x256xf32> to vector<2x64xf32>
    %19 = arith.negf %18 : vector<2x64xf32>
    %20 = math.exp %19 : vector<2x64xf32>
    %cst_11 = arith.constant 1.000000e+00 : f32
    %21 = vector.broadcast %cst_11 : f32 to vector<2x64xf32>
    %22 = arith.addf %21, %20 : vector<2x64xf32>
    %23 = arith.divf %21, %22 : vector<2x64xf32>
    %24 = vector.extract_strided_slice %11 {offsets = [0, 128], sizes = [2, 64], strides = [1, 1]} : vector<2x256xf32> to vector<2x64xf32>
    %25 = math.tanh %24 : vector<2x64xf32>
    %26 = vector.extract_strided_slice %11 {offsets = [0, 192], sizes = [2, 64], strides = [1, 1]} : vector<2x256xf32> to vector<2x64xf32>
    %27 = arith.negf %26 : vector<2x64xf32>
    %28 = math.exp %27 : vector<2x64xf32>
    %cst_12 = arith.constant 1.000000e+00 : f32
    %29 = vector.broadcast %cst_12 : f32 to vector<2x64xf32>
    %30 = arith.addf %29, %28 : vector<2x64xf32>
    %31 = arith.divf %29, %30 : vector<2x64xf32>
    %32 = arith.mulf %23, %8 : vector<2x64xf32>
    %33 = arith.mulf %17, %25 : vector<2x64xf32>
    %34 = arith.addf %32, %33 : vector<2x64xf32>
    %35 = math.tanh %34 : vector<2x64xf32>
    %36 = arith.mulf %31, %35 : vector<2x64xf32>
    %37 = vector.extract_strided_slice %36 {offsets = [0, 0], sizes = [2, 32], strides = [1, 1]} : vector<2x64xf32> to vector<2x32xf32>
    %c0_13 = arith.constant 0 : index
    %c0_14 = arith.constant 0 : index
    %38 = vector.load %arg9[%c0_13, %c0_14] : memref<16x64xf32, #tpu.memory_space<vmem>>, vector<2x32xf32>
    tpu.vector_store %arg9[%c0_13, %c0_14], %37 {strides = array<i32>} : memref<16x64xf32, #tpu.memory_space<vmem>>, vector<2x32xf32>,
    %39 = vector.extract_strided_slice %36 {offsets = [0, 32], sizes = [2, 32], strides = [1, 1]} : vector<2x64xf32> to vector<2x32xf32>
    %c14 = arith.constant 14 : index
    %c32 = arith.constant 32 : index
    %40 = vector.load %arg9[%c14, %c32] : memref<16x64xf32, #tpu.memory_space<vmem>>, vector<2x32xf32>
    tpu.vector_store %arg9[%c14, %c32], %39 {strides = array<i32>} : memref<16x64xf32, #tpu.memory_space<vmem>>, vector<2x32xf32>,
    %41 = vector.extract_strided_slice %5 {offsets = [2, 0], sizes = [2, 256], strides = [1, 1]} : vector<16x256xf32> to vector<2x256xf32>
    %cst_15 = arith.constant dense<0.000000e+00> : vector<2x256xf32>
    %42 = tpu.matmul %36, %6, %cst_15 {dimension_numbers = #tpu.dot_dimension_numbers<[1], [0], [0], [1], [0, 0, 1, 1], [], []>} : vector<2x64xf32>, vector<64x256xf32>, vector<2x256xf32> -> vector<2x256xf32>
    %43 = arith.addf %41, %42 : vector<2x256xf32>
    %44 = vector.extract_strided_slice %43 {offsets = [0, 0], sizes = [2, 64], strides = [1, 1]} : vector<2x256xf32> to vector<2x64xf32>
    %45 = arith.negf %44 : vector<2x64xf32>
    %46 = math.exp %45 : vector<2x64xf32>
    %cst_16 = arith.constant 1.000000e+00 : f32
    %47 = vector.broadcast %cst_16 : f32 to vector<2x64xf32>
    %48 = arith.addf %47, %46 : vector<2x64xf32>
    %49 = arith.divf %47, %48 : vector<2x64xf32>
    %50 = vector.extract_strided_slice %43 {offsets = [0, 64], sizes = [2, 64], strides = [1, 1]} : vector<2x256xf32> to vector<2x64xf32>
    %51 = arith.negf %50 : vector<2x64xf32>
    %52 = math.exp %51 : vector<2x64xf32>
    %cst_17 = arith.constant 1.000000e+00 : f32
    %53 = vector.broadcast %cst_17 : f32 to vector<2x64xf32>
    %54 = arith.addf %53, %52 : vector<2x64xf32>
    %55 = arith.divf %53, %54 : vector<2x64xf32>
    %56 = vector.extract_strided_slice %43 {offsets = [0, 128], sizes = [2, 64], strides = [1, 1]} : vector<2x256xf32> to vector<2x64xf32>
    %57 = math.tanh %56 : vector<2x64xf32>
    %58 = vector.extract_strided_slice %43 {offsets = [0, 192], sizes = [2, 64], strides = [1, 1]} : vector<2x256xf32> to vector<2x64xf32>
    %59 = arith.negf %58 : vector<2x64xf32>
    %60 = math.exp %59 : vector<2x64xf32>
    %cst_18 = arith.constant 1.000000e+00 : f32
    %61 = vector.broadcast %cst_18 : f32 to vector<2x64xf32>
    %62 = arith.addf %61, %60 : vector<2x64xf32>
    %63 = arith.divf %61, %62 : vector<2x64xf32>
    %64 = arith.mulf %55, %34 : vector<2x64xf32>
    %65 = arith.mulf %49, %57 : vector<2x64xf32>
    %66 = arith.addf %64, %65 : vector<2x64xf32>
    %67 = math.tanh %66 : vector<2x64xf32>
    %68 = arith.mulf %63, %67 : vector<2x64xf32>
    %69 = vector.extract_strided_slice %68 {offsets = [0, 0], sizes = [2, 32], strides = [1, 1]} : vector<2x64xf32> to vector<2x32xf32>
    %c2 = arith.constant 2 : index
    %c0_19 = arith.constant 0 : index
    %70 = vector.load %arg9[%c2, %c0_19] : memref<16x64xf32, #tpu.memory_space<vmem>>, vector<2x32xf32>
    tpu.vector_store %arg9[%c2, %c0_19], %69 {strides = array<i32>} : memref<16x64xf32, #tpu.memory_space<vmem>>, vector<2x32xf32>,
    %71 = vector.extract_strided_slice %68 {offsets = [0, 32], sizes = [2, 32], strides = [1, 1]} : vector<2x64xf32> to vector<2x32xf32>
    %c12 = arith.constant 12 : index
    %c32_20 = arith.constant 32 : index
    %72 = vector.load %arg9[%c12, %c32_20] : memref<16x64xf32, #tpu.memory_space<vmem>>, vector<2x32xf32>
    tpu.vector_store %arg9[%c12, %c32_20], %71 {strides = array<i32>} : memref<16x64xf32, #tpu.memory_space<vmem>>, vector<2x32xf32>,
    %73 = vector.extract_strided_slice %5 {offsets = [4, 0], sizes = [2, 256], strides = [1, 1]} : vector<16x256xf32> to vector<2x256xf32>
    %cst_21 = arith.constant dense<0.000000e+00> : vector<2x256xf32>
    %74 = tpu.matmul %68, %6, %cst_21 {dimension_numbers = #tpu.dot_dimension_numbers<[1], [0], [0], [1], [0, 0, 1, 1], [], []>} : vector<2x64xf32>, vector<64x256xf32>, vector<2x256xf32> -> vector<2x256xf32>
    %75 = arith.addf %73, %74 : vector<2x256xf32>
    %76 = vector.extract_strided_slice %75 {offsets = [0, 0], sizes = [2, 64], strides = [1, 1]} : vector<2x256xf32> to vector<2x64xf32>
    %77 = arith.negf %76 : vector<2x64xf32>
    %78 = math.exp %77 : vector<2x64xf32>
    %cst_22 = arith.constant 1.000000e+00 : f32
    %79 = vector.broadcast %cst_22 : f32 to vector<2x64xf32>
    %80 = arith.addf %79, %78 : vector<2x64xf32>
    %81 = arith.divf %79, %80 : vector<2x64xf32>
    %82 = vector.extract_strided_slice %75 {offsets = [0, 64], sizes = [2, 64], strides = [1, 1]} : vector<2x256xf32> to vector<2x64xf32>
    %83 = arith.negf %82 : vector<2x64xf32>
    %84 = math.exp %83 : vector<2x64xf32>
    %cst_23 = arith.constant 1.000000e+00 : f32
    %85 = vector.broadcast %cst_23 : f32 to vector<2x64xf32>
    %86 = arith.addf %85, %84 : vector<2x64xf32>
    %87 = arith.divf %85, %86 : vector<2x64xf32>
    %88 = vector.extract_strided_slice %75 {offsets = [0, 128], sizes = [2, 64], strides = [1, 1]} : vector<2x256xf32> to vector<2x64xf32>
    %89 = math.tanh %88 : vector<2x64xf32>
    %90 = vector.extract_strided_slice %75 {offsets = [0, 192], sizes = [2, 64], strides = [1, 1]} : vector<2x256xf32> to vector<2x64xf32>
    %91 = arith.negf %90 : vector<2x64xf32>
    %92 = math.exp %91 : vector<2x64xf32>
    %cst_24 = arith.constant 1.000000e+00 : f32
    %93 = vector.broadcast %cst_24 : f32 to vector<2x64xf32>
    %94 = arith.addf %93, %92 : vector<2x64xf32>
    %95 = arith.divf %93, %94 : vector<2x64xf32>
    %96 = arith.mulf %87, %66 : vector<2x64xf32>
    %97 = arith.mulf %81, %89 : vector<2x64xf32>
    %98 = arith.addf %96, %97 : vector<2x64xf32>
    %99 = math.tanh %98 : vector<2x64xf32>
    %100 = arith.mulf %95, %99 : vector<2x64xf32>
    %101 = vector.extract_strided_slice %100 {offsets = [0, 0], sizes = [2, 32], strides = [1, 1]} : vector<2x64xf32> to vector<2x32xf32>
    %c4 = arith.constant 4 : index
    %c0_25 = arith.constant 0 : index
    %102 = vector.load %arg9[%c4, %c0_25] : memref<16x64xf32, #tpu.memory_space<vmem>>, vector<2x32xf32>
    tpu.vector_store %arg9[%c4, %c0_25], %101 {strides = array<i32>} : memref<16x64xf32, #tpu.memory_space<vmem>>, vector<2x32xf32>,
    %103 = vector.extract_strided_slice %100 {offsets = [0, 32], sizes = [2, 32], strides = [1, 1]} : vector<2x64xf32> to vector<2x32xf32>
    %c10 = arith.constant 10 : index
    %c32_26 = arith.constant 32 : index
    %104 = vector.load %arg9[%c10, %c32_26] : memref<16x64xf32, #tpu.memory_space<vmem>>, vector<2x32xf32>
    tpu.vector_store %arg9[%c10, %c32_26], %103 {strides = array<i32>} : memref<16x64xf32, #tpu.memory_space<vmem>>, vector<2x32xf32>,
    %105 = vector.extract_strided_slice %5 {offsets = [6, 0], sizes = [2, 256], strides = [1, 1]} : vector<16x256xf32> to vector<2x256xf32>
    %cst_27 = arith.constant dense<0.000000e+00> : vector<2x256xf32>
    %106 = tpu.matmul %100, %6, %cst_27 {dimension_numbers = #tpu.dot_dimension_numbers<[1], [0], [0], [1], [0, 0, 1, 1], [], []>} : vector<2x64xf32>, vector<64x256xf32>, vector<2x256xf32> -> vector<2x256xf32>
    %107 = arith.addf %105, %106 : vector<2x256xf32>
    %108 = vector.extract_strided_slice %107 {offsets = [0, 0], sizes = [2, 64], strides = [1, 1]} : vector<2x256xf32> to vector<2x64xf32>
    %109 = arith.negf %108 : vector<2x64xf32>
    %110 = math.exp %109 : vector<2x64xf32>
    %cst_28 = arith.constant 1.000000e+00 : f32
    %111 = vector.broadcast %cst_28 : f32 to vector<2x64xf32>
    %112 = arith.addf %111, %110 : vector<2x64xf32>
    %113 = arith.divf %111, %112 : vector<2x64xf32>
    %114 = vector.extract_strided_slice %107 {offsets = [0, 64], sizes = [2, 64], strides = [1, 1]} : vector<2x256xf32> to vector<2x64xf32>
    %115 = arith.negf %114 : vector<2x64xf32>
    %116 = math.exp %115 : vector<2x64xf32>
    %cst_29 = arith.constant 1.000000e+00 : f32
    %117 = vector.broadcast %cst_29 : f32 to vector<2x64xf32>
    %118 = arith.addf %117, %116 : vector<2x64xf32>
    %119 = arith.divf %117, %118 : vector<2x64xf32>
    %120 = vector.extract_strided_slice %107 {offsets = [0, 128], sizes = [2, 64], strides = [1, 1]} : vector<2x256xf32> to vector<2x64xf32>
    %121 = math.tanh %120 : vector<2x64xf32>
    %122 = vector.extract_strided_slice %107 {offsets = [0, 192], sizes = [2, 64], strides = [1, 1]} : vector<2x256xf32> to vector<2x64xf32>
    %123 = arith.negf %122 : vector<2x64xf32>
    %124 = math.exp %123 : vector<2x64xf32>
    %cst_30 = arith.constant 1.000000e+00 : f32
    %125 = vector.broadcast %cst_30 : f32 to vector<2x64xf32>
    %126 = arith.addf %125, %124 : vector<2x64xf32>
    %127 = arith.divf %125, %126 : vector<2x64xf32>
    %128 = arith.mulf %119, %98 : vector<2x64xf32>
    %129 = arith.mulf %113, %121 : vector<2x64xf32>
    %130 = arith.addf %128, %129 : vector<2x64xf32>
    %131 = math.tanh %130 : vector<2x64xf32>
    %132 = arith.mulf %127, %131 : vector<2x64xf32>
    %133 = vector.extract_strided_slice %132 {offsets = [0, 0], sizes = [2, 32], strides = [1, 1]} : vector<2x64xf32> to vector<2x32xf32>
    %c6 = arith.constant 6 : index
    %c0_31 = arith.constant 0 : index
    %134 = vector.load %arg9[%c6, %c0_31] : memref<16x64xf32, #tpu.memory_space<vmem>>, vector<2x32xf32>
    tpu.vector_store %arg9[%c6, %c0_31], %133 {strides = array<i32>} : memref<16x64xf32, #tpu.memory_space<vmem>>, vector<2x32xf32>,
    %135 = vector.extract_strided_slice %132 {offsets = [0, 32], sizes = [2, 32], strides = [1, 1]} : vector<2x64xf32> to vector<2x32xf32>
    %c8 = arith.constant 8 : index
    %c32_32 = arith.constant 32 : index
    %136 = vector.load %arg9[%c8, %c32_32] : memref<16x64xf32, #tpu.memory_space<vmem>>, vector<2x32xf32>
    tpu.vector_store %arg9[%c8, %c32_32], %135 {strides = array<i32>} : memref<16x64xf32, #tpu.memory_space<vmem>>, vector<2x32xf32>,
    %137 = vector.extract_strided_slice %5 {offsets = [8, 0], sizes = [2, 256], strides = [1, 1]} : vector<16x256xf32> to vector<2x256xf32>
    %cst_33 = arith.constant dense<0.000000e+00> : vector<2x256xf32>
    %138 = tpu.matmul %132, %6, %cst_33 {dimension_numbers = #tpu.dot_dimension_numbers<[1], [0], [0], [1], [0, 0, 1, 1], [], []>} : vector<2x64xf32>, vector<64x256xf32>, vector<2x256xf32> -> vector<2x256xf32>
    %139 = arith.addf %137, %138 : vector<2x256xf32>
    %140 = vector.extract_strided_slice %139 {offsets = [0, 0], sizes = [2, 64], strides = [1, 1]} : vector<2x256xf32> to vector<2x64xf32>
    %141 = arith.negf %140 : vector<2x64xf32>
    %142 = math.exp %141 : vector<2x64xf32>
    %cst_34 = arith.constant 1.000000e+00 : f32
    %143 = vector.broadcast %cst_34 : f32 to vector<2x64xf32>
    %144 = arith.addf %143, %142 : vector<2x64xf32>
    %145 = arith.divf %143, %144 : vector<2x64xf32>
    %146 = vector.extract_strided_slice %139 {offsets = [0, 64], sizes = [2, 64], strides = [1, 1]} : vector<2x256xf32> to vector<2x64xf32>
    %147 = arith.negf %146 : vector<2x64xf32>
    %148 = math.exp %147 : vector<2x64xf32>
    %cst_35 = arith.constant 1.000000e+00 : f32
    %149 = vector.broadcast %cst_35 : f32 to vector<2x64xf32>
    %150 = arith.addf %149, %148 : vector<2x64xf32>
    %151 = arith.divf %149, %150 : vector<2x64xf32>
    %152 = vector.extract_strided_slice %139 {offsets = [0, 128], sizes = [2, 64], strides = [1, 1]} : vector<2x256xf32> to vector<2x64xf32>
    %153 = math.tanh %152 : vector<2x64xf32>
    %154 = vector.extract_strided_slice %139 {offsets = [0, 192], sizes = [2, 64], strides = [1, 1]} : vector<2x256xf32> to vector<2x64xf32>
    %155 = arith.negf %154 : vector<2x64xf32>
    %156 = math.exp %155 : vector<2x64xf32>
    %cst_36 = arith.constant 1.000000e+00 : f32
    %157 = vector.broadcast %cst_36 : f32 to vector<2x64xf32>
    %158 = arith.addf %157, %156 : vector<2x64xf32>
    %159 = arith.divf %157, %158 : vector<2x64xf32>
    %160 = arith.mulf %151, %130 : vector<2x64xf32>
    %161 = arith.mulf %145, %153 : vector<2x64xf32>
    %162 = arith.addf %160, %161 : vector<2x64xf32>
    %163 = math.tanh %162 : vector<2x64xf32>
    %164 = arith.mulf %159, %163 : vector<2x64xf32>
    %165 = vector.extract_strided_slice %164 {offsets = [0, 0], sizes = [2, 32], strides = [1, 1]} : vector<2x64xf32> to vector<2x32xf32>
    %c8_37 = arith.constant 8 : index
    %c0_38 = arith.constant 0 : index
    %166 = vector.load %arg9[%c8_37, %c0_38] : memref<16x64xf32, #tpu.memory_space<vmem>>, vector<2x32xf32>
    tpu.vector_store %arg9[%c8_37, %c0_38], %165 {strides = array<i32>} : memref<16x64xf32, #tpu.memory_space<vmem>>, vector<2x32xf32>,
    %167 = vector.extract_strided_slice %164 {offsets = [0, 32], sizes = [2, 32], strides = [1, 1]} : vector<2x64xf32> to vector<2x32xf32>
    %c6_39 = arith.constant 6 : index
    %c32_40 = arith.constant 32 : index
    %168 = vector.load %arg9[%c6_39, %c32_40] : memref<16x64xf32, #tpu.memory_space<vmem>>, vector<2x32xf32>
    tpu.vector_store %arg9[%c6_39, %c32_40], %167 {strides = array<i32>} : memref<16x64xf32, #tpu.memory_space<vmem>>, vector<2x32xf32>,
    %169 = vector.extract_strided_slice %5 {offsets = [10, 0], sizes = [2, 256], strides = [1, 1]} : vector<16x256xf32> to vector<2x256xf32>
    %cst_41 = arith.constant dense<0.000000e+00> : vector<2x256xf32>
    %170 = tpu.matmul %164, %6, %cst_41 {dimension_numbers = #tpu.dot_dimension_numbers<[1], [0], [0], [1], [0, 0, 1, 1], [], []>} : vector<2x64xf32>, vector<64x256xf32>, vector<2x256xf32> -> vector<2x256xf32>
    %171 = arith.addf %169, %170 : vector<2x256xf32>
    %172 = vector.extract_strided_slice %171 {offsets = [0, 0], sizes = [2, 64], strides = [1, 1]} : vector<2x256xf32> to vector<2x64xf32>
    %173 = arith.negf %172 : vector<2x64xf32>
    %174 = math.exp %173 : vector<2x64xf32>
    %cst_42 = arith.constant 1.000000e+00 : f32
    %175 = vector.broadcast %cst_42 : f32 to vector<2x64xf32>
    %176 = arith.addf %175, %174 : vector<2x64xf32>
    %177 = arith.divf %175, %176 : vector<2x64xf32>
    %178 = vector.extract_strided_slice %171 {offsets = [0, 64], sizes = [2, 64], strides = [1, 1]} : vector<2x256xf32> to vector<2x64xf32>
    %179 = arith.negf %178 : vector<2x64xf32>
    %180 = math.exp %179 : vector<2x64xf32>
    %cst_43 = arith.constant 1.000000e+00 : f32
    %181 = vector.broadcast %cst_43 : f32 to vector<2x64xf32>
    %182 = arith.addf %181, %180 : vector<2x64xf32>
    %183 = arith.divf %181, %182 : vector<2x64xf32>
    %184 = vector.extract_strided_slice %171 {offsets = [0, 128], sizes = [2, 64], strides = [1, 1]} : vector<2x256xf32> to vector<2x64xf32>
    %185 = math.tanh %184 : vector<2x64xf32>
    %186 = vector.extract_strided_slice %171 {offsets = [0, 192], sizes = [2, 64], strides = [1, 1]} : vector<2x256xf32> to vector<2x64xf32>
    %187 = arith.negf %186 : vector<2x64xf32>
    %188 = math.exp %187 : vector<2x64xf32>
    %cst_44 = arith.constant 1.000000e+00 : f32
    %189 = vector.broadcast %cst_44 : f32 to vector<2x64xf32>
    %190 = arith.addf %189, %188 : vector<2x64xf32>
    %191 = arith.divf %189, %190 : vector<2x64xf32>
    %192 = arith.mulf %183, %162 : vector<2x64xf32>
    %193 = arith.mulf %177, %185 : vector<2x64xf32>
    %194 = arith.addf %192, %193 : vector<2x64xf32>
    %195 = math.tanh %194 : vector<2x64xf32>
    %196 = arith.mulf %191, %195 : vector<2x64xf32>
    %197 = vector.extract_strided_slice %196 {offsets = [0, 0], sizes = [2, 32], strides = [1, 1]} : vector<2x64xf32> to vector<2x32xf32>
    %c10_45 = arith.constant 10 : index
    %c0_46 = arith.constant 0 : index
    %198 = vector.load %arg9[%c10_45, %c0_46] : memref<16x64xf32, #tpu.memory_space<vmem>>, vector<2x32xf32>
    tpu.vector_store %arg9[%c10_45, %c0_46], %197 {strides = array<i32>} : memref<16x64xf32, #tpu.memory_space<vmem>>, vector<2x32xf32>,
    %199 = vector.extract_strided_slice %196 {offsets = [0, 32], sizes = [2, 32], strides = [1, 1]} : vector<2x64xf32> to vector<2x32xf32>
    %c4_47 = arith.constant 4 : index
    %c32_48 = arith.constant 32 : index
    %200 = vector.load %arg9[%c4_47, %c32_48] : memref<16x64xf32, #tpu.memory_space<vmem>>, vector<2x32xf32>
    tpu.vector_store %arg9[%c4_47, %c32_48], %199 {strides = array<i32>} : memref<16x64xf32, #tpu.memory_space<vmem>>, vector<2x32xf32>,
    %201 = vector.extract_strided_slice %5 {offsets = [12, 0], sizes = [2, 256], strides = [1, 1]} : vector<16x256xf32> to vector<2x256xf32>
    %cst_49 = arith.constant dense<0.000000e+00> : vector<2x256xf32>
    %202 = tpu.matmul %196, %6, %cst_49 {dimension_numbers = #tpu.dot_dimension_numbers<[1], [0], [0], [1], [0, 0, 1, 1], [], []>} : vector<2x64xf32>, vector<64x256xf32>, vector<2x256xf32> -> vector<2x256xf32>
    %203 = arith.addf %201, %202 : vector<2x256xf32>
    %204 = vector.extract_strided_slice %203 {offsets = [0, 0], sizes = [2, 64], strides = [1, 1]} : vector<2x256xf32> to vector<2x64xf32>
    %205 = arith.negf %204 : vector<2x64xf32>
    %206 = math.exp %205 : vector<2x64xf32>
    %cst_50 = arith.constant 1.000000e+00 : f32
    %207 = vector.broadcast %cst_50 : f32 to vector<2x64xf32>
    %208 = arith.addf %207, %206 : vector<2x64xf32>
    %209 = arith.divf %207, %208 : vector<2x64xf32>
    %210 = vector.extract_strided_slice %203 {offsets = [0, 64], sizes = [2, 64], strides = [1, 1]} : vector<2x256xf32> to vector<2x64xf32>
    %211 = arith.negf %210 : vector<2x64xf32>
    %212 = math.exp %211 : vector<2x64xf32>
    %cst_51 = arith.constant 1.000000e+00 : f32
    %213 = vector.broadcast %cst_51 : f32 to vector<2x64xf32>
    %214 = arith.addf %213, %212 : vector<2x64xf32>
    %215 = arith.divf %213, %214 : vector<2x64xf32>
    %216 = vector.extract_strided_slice %203 {offsets = [0, 128], sizes = [2, 64], strides = [1, 1]} : vector<2x256xf32> to vector<2x64xf32>
    %217 = math.tanh %216 : vector<2x64xf32>
    %218 = vector.extract_strided_slice %203 {offsets = [0, 192], sizes = [2, 64], strides = [1, 1]} : vector<2x256xf32> to vector<2x64xf32>
    %219 = arith.negf %218 : vector<2x64xf32>
    %220 = math.exp %219 : vector<2x64xf32>
    %cst_52 = arith.constant 1.000000e+00 : f32
    %221 = vector.broadcast %cst_52 : f32 to vector<2x64xf32>
    %222 = arith.addf %221, %220 : vector<2x64xf32>
    %223 = arith.divf %221, %222 : vector<2x64xf32>
    %224 = arith.mulf %215, %194 : vector<2x64xf32>
    %225 = arith.mulf %209, %217 : vector<2x64xf32>
    %226 = arith.addf %224, %225 : vector<2x64xf32>
    %227 = math.tanh %226 : vector<2x64xf32>
    %228 = arith.mulf %223, %227 : vector<2x64xf32>
    %229 = vector.extract_strided_slice %228 {offsets = [0, 0], sizes = [2, 32], strides = [1, 1]} : vector<2x64xf32> to vector<2x32xf32>
    %c12_53 = arith.constant 12 : index
    %c0_54 = arith.constant 0 : index
    %230 = vector.load %arg9[%c12_53, %c0_54] : memref<16x64xf32, #tpu.memory_space<vmem>>, vector<2x32xf32>
    tpu.vector_store %arg9[%c12_53, %c0_54], %229 {strides = array<i32>} : memref<16x64xf32, #tpu.memory_space<vmem>>, vector<2x32xf32>,
    %231 = vector.extract_strided_slice %228 {offsets = [0, 32], sizes = [2, 32], strides = [1, 1]} : vector<2x64xf32> to vector<2x32xf32>
    %c2_55 = arith.constant 2 : index
    %c32_56 = arith.constant 32 : index
    %232 = vector.load %arg9[%c2_55, %c32_56] : memref<16x64xf32, #tpu.memory_space<vmem>>, vector<2x32xf32>
    tpu.vector_store %arg9[%c2_55, %c32_56], %231 {strides = array<i32>} : memref<16x64xf32, #tpu.memory_space<vmem>>, vector<2x32xf32>,
    %233 = vector.extract_strided_slice %5 {offsets = [14, 0], sizes = [2, 256], strides = [1, 1]} : vector<16x256xf32> to vector<2x256xf32>
    %cst_57 = arith.constant dense<0.000000e+00> : vector<2x256xf32>
    %234 = tpu.matmul %228, %6, %cst_57 {dimension_numbers = #tpu.dot_dimension_numbers<[1], [0], [0], [1], [0, 0, 1, 1], [], []>} : vector<2x64xf32>, vector<64x256xf32>, vector<2x256xf32> -> vector<2x256xf32>
    %235 = arith.addf %233, %234 : vector<2x256xf32>
    %236 = vector.extract_strided_slice %235 {offsets = [0, 0], sizes = [2, 64], strides = [1, 1]} : vector<2x256xf32> to vector<2x64xf32>
    %237 = arith.negf %236 : vector<2x64xf32>
    %238 = math.exp %237 : vector<2x64xf32>
    %cst_58 = arith.constant 1.000000e+00 : f32
    %239 = vector.broadcast %cst_58 : f32 to vector<2x64xf32>
    %240 = arith.addf %239, %238 : vector<2x64xf32>
    %241 = arith.divf %239, %240 : vector<2x64xf32>
    %242 = vector.extract_strided_slice %235 {offsets = [0, 64], sizes = [2, 64], strides = [1, 1]} : vector<2x256xf32> to vector<2x64xf32>
    %243 = arith.negf %242 : vector<2x64xf32>
    %244 = math.exp %243 : vector<2x64xf32>
    %cst_59 = arith.constant 1.000000e+00 : f32
    %245 = vector.broadcast %cst_59 : f32 to vector<2x64xf32>
    %246 = arith.addf %245, %244 : vector<2x64xf32>
    %247 = arith.divf %245, %246 : vector<2x64xf32>
    %248 = vector.extract_strided_slice %235 {offsets = [0, 128], sizes = [2, 64], strides = [1, 1]} : vector<2x256xf32> to vector<2x64xf32>
    %249 = math.tanh %248 : vector<2x64xf32>
    %250 = vector.extract_strided_slice %235 {offsets = [0, 192], sizes = [2, 64], strides = [1, 1]} : vector<2x256xf32> to vector<2x64xf32>
    %251 = arith.negf %250 : vector<2x64xf32>
    %252 = math.exp %251 : vector<2x64xf32>
    %cst_60 = arith.constant 1.000000e+00 : f32
    %253 = vector.broadcast %cst_60 : f32 to vector<2x64xf32>
    %254 = arith.addf %253, %252 : vector<2x64xf32>
    %255 = arith.divf %253, %254 : vector<2x64xf32>
    %256 = arith.mulf %247, %226 : vector<2x64xf32>
    %257 = arith.mulf %241, %249 : vector<2x64xf32>
    %258 = arith.addf %256, %257 : vector<2x64xf32>
    %259 = math.tanh %258 : vector<2x64xf32>
    %260 = arith.mulf %255, %259 : vector<2x64xf32>
    %261 = vector.extract_strided_slice %260 {offsets = [0, 0], sizes = [2, 32], strides = [1, 1]} : vector<2x64xf32> to vector<2x32xf32>
    %c14_61 = arith.constant 14 : index
    %c0_62 = arith.constant 0 : index
    %262 = vector.load %arg9[%c14_61, %c0_62] : memref<16x64xf32, #tpu.memory_space<vmem>>, vector<2x32xf32>
    tpu.vector_store %arg9[%c14_61, %c0_62], %261 {strides = array<i32>} : memref<16x64xf32, #tpu.memory_space<vmem>>, vector<2x32xf32>,
    %263 = vector.extract_strided_slice %260 {offsets = [0, 32], sizes = [2, 32], strides = [1, 1]} : vector<2x64xf32> to vector<2x32xf32>
    %c0_63 = arith.constant 0 : index
    %c32_64 = arith.constant 32 : index
    %264 = vector.load %arg9[%c0_63, %c32_64] : memref<16x64xf32, #tpu.memory_space<vmem>>, vector<2x32xf32>
    tpu.vector_store %arg9[%c0_63, %c32_64], %263 {strides = array<i32>} : memref<16x64xf32, #tpu.memory_space<vmem>>, vector<2x32xf32>,
    %c0_65 = arith.constant 0 : index
    %c0_66 = arith.constant 0 : index
    %265 = vector.load %arg9[%c0_65, %c0_66] : memref<16x64xf32, #tpu.memory_space<vmem>>, vector<16x64xf32>
    %c0_67 = arith.constant 0 : index
    %c0_68 = arith.constant 0 : index
    %266 = vector.load %arg4[%c0_67, %c0_68] : memref<64x64xf32, #tpu.memory_space<vmem>>, vector<64x64xf32>
    %cst_69 = arith.constant dense<0.000000e+00> : vector<16x64xf32>
    %267 = tpu.matmul %265, %266, %cst_69 {dimension_numbers = #tpu.dot_dimension_numbers<[1], [0], [0], [1], [0, 0, 1, 1], [], []>} : vector<16x64xf32>, vector<64x64xf32>, vector<16x64xf32> -> vector<16x64xf32>
    %c0_70 = arith.constant 0 : index
    %c0_71 = arith.constant 0 : index
    %268 = vector.load %arg5[%c0_70, %c0_71] : memref<1x64xf32, #tpu.memory_space<vmem>>, vector<1x64xf32>
    %269 = vector.broadcast %268 : vector<1x64xf32> to vector<16x64xf32>
    %270 = arith.addf %267, %269 : vector<16x64xf32>
    %271 = math.tanh %270 : vector<16x64xf32>
    %c0_72 = arith.constant 0 : index
    %c0_73 = arith.constant 0 : index
    %272 = vector.load %arg6[%c0_72, %c0_73] : memref<1x64xf32, #tpu.memory_space<vmem>>, vector<1x64xf32>
    %273 = vector.broadcast %272 : vector<1x64xf32> to vector<16x64xf32>
    %274 = arith.mulf %271, %273 : vector<16x64xf32>
    %cst_74 = arith.constant dense<0.000000e+00> : vector<16xf32>
    %275 = vector.multi_reduction <add>, %274, %cst_74 [1] : vector<16x64xf32> to vector<16xf32>
    %276 = vector.shape_cast %275 : vector<16xf32> to vector<16x1xf32>
    %277 = vector.shape_cast %276 : vector<16x1xf32> to vector<1x16x1xf32>
    %cst_75 = arith.constant dense<0xFF800000> : vector<1xf32>
    %278 = vector.multi_reduction <maximumf>, %277, %cst_75 [1, 2] : vector<1x16x1xf32> to vector<1xf32>
    %279 = vector.shape_cast %278 : vector<1xf32> to vector<1x1x1xf32>
    %280 = vector.extract %279[0, 0, 0] : f32 from vector<1x1x1xf32>
    %281 = vector.broadcast %280 : f32 to vector<1x1xf32>
    %282 = vector.broadcast %281 : vector<1x1xf32> to vector<16x1xf32>
    %283 = arith.subf %276, %282 : vector<16x1xf32>
    %284 = math.exp %283 : vector<16x1xf32>
    %c0_76 = arith.constant 0 : index
    %c0_77 = arith.constant 0 : index
    %285 = vector.load %arg7[%c0_76, %c0_77] : memref<2x16xf32, #tpu.memory_space<vmem>>, vector<2x16xf32>
    %286 = vector.broadcast %284 : vector<16x1xf32> to vector<16x64xf32>
    %287 = arith.mulf %286, %265 : vector<16x64xf32>
    %cst_78 = arith.constant dense<0.000000e+00> : vector<2x64xf32>
    %288 = tpu.matmul %285, %287, %cst_78 {dimension_numbers = #tpu.dot_dimension_numbers<[1], [0], [0], [1], [0, 0, 1, 1], [], []>} : vector<2x16xf32>, vector<16x64xf32>, vector<2x64xf32> -> vector<2x64xf32>
    %c0_79 = arith.constant 0 : index
    %c0_80 = arith.constant 0 : index
    %289 = vector.load %arg7[%c0_79, %c0_80] : memref<2x16xf32, #tpu.memory_space<vmem>>, vector<2x16xf32>
    %cst_81 = arith.constant dense<0.000000e+00> : vector<2x1xf32>
    %290 = tpu.matmul %289, %284, %cst_81 {dimension_numbers = #tpu.dot_dimension_numbers<[1], [0], [0], [1], [0, 0, 1, 1], [], []>} : vector<2x16xf32>, vector<16x1xf32>, vector<2x1xf32> -> vector<2x1xf32>
    %291 = tpu.reciprocal %290 {approx = true} : vector<2x1xf32> -> vector<2x1xf32>
    %292 = vector.broadcast %291 : vector<2x1xf32> to vector<2x64xf32>
    %293 = arith.mulf %288, %292 : vector<2x64xf32>
    %294 = vector.shape_cast %293 : vector<2x64xf32> to vector<2x1x64xf32>
    %c0_82 = arith.constant 0 : index
    %c0_83 = arith.constant 0 : index
    %c0_84 = arith.constant 0 : index
    %295 = vector.load %arg8[%c0_82, %c0_83, %c0_84] : memref<2x1x64xf32, #tpu.memory_space<vmem>>, vector<2x1x64xf32>
    tpu.vector_store %arg8[%c0_82, %c0_83, %c0_84], %294 {strides = array<i32>} : memref<2x1x64xf32, #tpu.memory_space<vmem>>, vector<2x1x64xf32>,
    return
  }
}

</mosaic_0001>

<llo_original>
// kernel: specific_forward.1
$region0: #{specific_forward.1}
  #allocation0 [shape = 'u32[]', space=smem, size = 0x4, offset = 0x4, fixed_abs, tag = 'smem constant byte address 0x4 - core index']
  #allocation1 [shape = 'u32[144,128]{1,0:T(1,128)}', space=vmem, size = 0x12000, scoped, tag = 'internal scratch']
  #allocation2 [shape = 'f32[16,64]{1,0:T(8,128)}', space=vmem, size = 0x2000, scoped, tag = 'scratch operand']
  %s0 = inlined_call_operand.vmem [shape: f32[16,64], index: 0, kind: input, shape index: {}]
  %s1 = inlined_call_operand.vmem [shape: f32[64,256], index: 1, kind: input, shape index: {}]
  %s2 = inlined_call_operand.vmem [shape: f32[64,256], index: 2, kind: input, shape index: {}]
  %s3 = inlined_call_operand.vmem [shape: f32[1,256], index: 3, kind: input, shape index: {}]
  %s4 = inlined_call_operand.vmem [shape: f32[64,64], index: 4, kind: input, shape index: {}]
  %s5 = inlined_call_operand.vmem [shape: f32[1,64], index: 5, kind: input, shape index: {}]
  %s6 = inlined_call_operand.vmem [shape: f32[1,64], index: 6, kind: input, shape index: {}]
  %s7 = inlined_call_operand.vmem [shape: f32[2,16], index: 7, kind: input, shape index: {}]
  %s8 = inlined_call_operand.hbm [shape: f32[2,1,64], index: 8, kind: output, shape index: {}]
  %s9 = sld [smem:[#allocation0]]
  $region42: #{specific_forward.1} parent=0
    _
  %s11 = ssub.s32 1, %s9
  %s12 = scalar_select 0, %s11, %s9
  $region1: #{specific_forward.1} parent=0
    #allocation3 [shape = 'u8[1024]{0}', space=vmem, size = 0x400, scoped, tag = 'output window, operand 0, single buffered']
    #allocation4 [shape = 's32[1]{0}', space=sflag, size = 0x4, scoped, tag = 'scoped memory for specific_forward.1']
    %13 = vsyncpa [#allocation4], 0
    // Predicated region
    $region2: #{specific_forward.1} parent=1 // pred_check
      _
    $region3: #{specific_forward.1} parent=1 // pred_check_branch
      %15 = sbr.rel (0) target = $region5
    $region4: #{specific_forward.1} parent=1 // pred_region
      _
    $region5: #{specific_forward.1} parent=1 // pred_fallthru
      _
    // Predicated region
    $region6: #{specific_forward.1} parent=1 // pred_check
      _
    $region7: #{specific_forward.1} parent=1 // pred_check_branch
      %17 = sbr.rel (0) target = $region9
    $region8: #{specific_forward.1} parent=1 // pred_region
      _
    $region9: #{specific_forward.1} parent=1 // pred_fallthru
      _
    // Predicated region
    $region10: #{specific_forward.1} parent=1 // pred_check
      _
    $region11: #{specific_forward.1} parent=1 // pred_check_branch
      %19 = sbr.rel (0) target = $region13
    $region12: #{specific_forward.1} parent=1 // pred_region
      _
    $region13: #{specific_forward.1} parent=1 // pred_fallthru
      _
    // Predicated region
    $region14: #{specific_forward.1} parent=1 // pred_check
      _
    $region15: #{specific_forward.1} parent=1 // pred_check_branch
      %21 = sbr.rel (0) target = $region17
    $region16: #{specific_forward.1} parent=1 // pred_region
      _
    $region17: #{specific_forward.1} parent=1 // pred_fallthru
      _
    // Predicated region
    $region18: #{specific_forward.1} parent=1 // pred_check
      _
    $region19: #{specific_forward.1} parent=1 // pred_check_branch
      %23 = sbr.rel (0) target = $region21
    $region20: #{specific_forward.1} parent=1 // pred_region
      _
    $region21: #{specific_forward.1} parent=1 // pred_fallthru
      _
    // Predicated region
    $region22: #{specific_forward.1} parent=1 // pred_check
      _
    $region23: #{specific_forward.1} parent=1 // pred_check_branch
      %25 = sbr.rel (0) target = $region25
    $region24: #{specific_forward.1} parent=1 // pred_region
      _
    $region25: #{specific_forward.1} parent=1 // pred_fallthru
      _
    // Predicated region
    $region26: #{specific_forward.1} parent=1 // pred_check
      _
    $region27: #{specific_forward.1} parent=1 // pred_check_branch
      %27 = sbr.rel (0) target = $region29
    $region28: #{specific_forward.1} parent=1 // pred_region
      _
    $region29: #{specific_forward.1} parent=1 // pred_fallthru
      _
    // Predicated region
    $region30: #{specific_forward.1} parent=1 // pred_check
      _
    $region31: #{specific_forward.1} parent=1 // pred_check_branch
      %29 = sbr.rel (0) target = $region33
    $region32: #{specific_forward.1} parent=1 // pred_region
      _
    $region33: #{specific_forward.1} parent=1 // pred_fallthru
      _
    %v30 = vld [vmem:[%s0] sm:$0xff]
    %v31 = vld [vmem:[%s0 + $0x8] sm:$0xff]
    %v32 = vld [vmem:[%s1] sm:$0xff]
    %v33 = vld [vmem:[%s1 + $0x8] sm:$0xff]
    %v34 = vld [vmem:[%s1 + $0x10] sm:$0xff]
    %v35 = vld [vmem:[%s1 + $0x18] sm:$0xff]
    %v36 = vld [vmem:[%s1 + $0x20] sm:$0xff]
    %v37 = vld [vmem:[%s1 + $0x28] sm:$0xff]
    %v38 = vld [vmem:[%s1 + $0x30] sm:$0xff]
    %v39 = vld [vmem:[%s1 + $0x38] sm:$0xff]
    %v40 = vld [vmem:[%s1 + $0x40] sm:$0xff]
    %v41 = vld [vmem:[%s1 + $0x48] sm:$0xff]
    %v42 = vld [vmem:[%s1 + $0x50] sm:$0xff]
    %v43 = vld [vmem:[%s1 + $0x58] sm:$0xff]
    %v44 = vld [vmem:[%s1 + $0x60] sm:$0xff]
    %v45 = vld [vmem:[%s1 + $0x68] sm:$0xff]
    %v46 = vld [vmem:[%s1 + $0x70] sm:$0xff]
    %v47 = vld [vmem:[%s1 + $0x78] sm:$0xff]
    %v48 = vld [vmem:[%s3] sm:$0x3]
    %v50 = vlaneseq
    %v51 = vshrl.u32 %v50, 7
    %v52 = vsub.s32 0, %v51
    %v53 = vrot.slane %v48, %v52
    %v54 = vlaneseq
    %v55 = vshrl.u32 %v54, 7
    %v56 = vsub.s32 1, %v55
    %v57 = vrot.slane %v48, %v56
    %vm60 = vcmask 523264
    %v62 = vsel %vm60, %v30, 0
    %v65 = vsel %vm60, %v31, 0
    %67 = vmatprep.subr.mxu0 0.0
    %68 = vmatpush1.msra.mxu0 0.0
    %69 = vmatprep.subr.mxu0 0.0
    %70 = vmatpush1.msra.mxu0 0.0
    %71 = vmatprep.subr.mxu0 0.0
    %72 = vmatpush1.msra.mxu0 0.0
    %73 = vmatprep.subr.mxu0 0.0
    %74 = vmatpush1.msra.mxu0 0.0
    %75 = vmatprep.subr.mxu0 0.0
    %76 = vmatpush1.msra.mxu0 0.0
    %77 = vmatprep.subr.mxu0 0.0
    %78 = vmatpush1.msra.mxu0 0.0
    %79 = vmatprep.subr.mxu0 0.0
    %80 = vmatpush1.msra.mxu0 0.0
    %81 = vmatprep.subr.mxu0 0.0
    %82 = vmatpush1.msra.mxu0 0.0
    %83 = vmatprep.subr.mxu0 %v47
    %84 = vmatpush1.msra.mxu0 %v46
    %85 = vmatprep.subr.mxu0 %v45
    %86 = vmatpush1.msra.mxu0 %v44
    %87 = vmatprep.subr.mxu0 %v43
    %88 = vmatpush1.msra.mxu0 %v42
    %89 = vmatprep.subr.mxu0 %v41
    %90 = vmatpush1.msra.mxu0 %v40
    %91 = vmatprep.subr.mxu0 %v39
    %92 = vmatpush1.msra.mxu0 %v38
    %93 = vmatprep.subr.mxu0 %v37
    %94 = vmatpush1.msra.mxu0 %v36
    %95 = vmatprep.subr.mxu0 %v35
    %96 = vmatpush1.msra.mxu0 %v34
    %97 = vmatprep.subr.mxu0 %v33
    %98 = vmatpush1.msra.mxu0 %v32
    %99 = vmatprep.subr.mxu0 0.0
    %100 = vmatpush2.msra.mxu0 0.0
    %101 = vmatprep.subr.mxu0 0.0
    %102 = vmatpush2.msra.mxu0 0.0
    %103 = vmatprep.subr.mxu0 0.0
    %104 = vmatpush2.msra.mxu0 0.0
    %105 = vmatprep.subr.mxu0 0.0
    %106 = vmatpush2.msra.mxu0 0.0
    %107 = vmatprep.subr.mxu0 0.0
    %108 = vmatpush2.msra.mxu0 0.0
    %109 = vmatprep.subr.mxu0 0.0
    %110 = vmatpush2.msra.mxu0 0.0
    %111 = vmatprep.subr.mxu0 0.0
    %112 = vmatpush2.msra.mxu0 0.0
    %113 = vmatprep.subr.mxu0 0.0
    %114 = vmatpush2.msra.mxu0 0.0
    %115 = vmatprep.subr.mxu0 0.0
    %116 = vmatpush2.msra.mxu0 0.0
    %117 = vmatprep.subr.mxu0 0.0
    %118 = vmatpush2.msra.mxu0 0.0
    %119 = vmatprep.subr.mxu0 0.0
    %120 = vmatpush2.msra.mxu0 0.0
    %121 = vmatprep.subr.mxu0 0.0
    %122 = vmatpush2.msra.mxu0 0.0
    %123 = vmatprep.subr.mxu0 0.0
    %124 = vmatpush2.msra.mxu0 0.0
    %125 = vmatprep.subr.mxu0 0.0
    %126 = vmatpush2.msra.mxu0 0.0
    %127 = vmatprep.subr.mxu0 0.0
    %128 = vmatpush2.msra.mxu0 0.0
    %129 = vmatprep.subr.mxu0 0.0
    %130 = vmatpush2.msra.mxu0 0.0
    %131 = vmatprep.mubr.f32.mxu0 0.0
    %132 = vmatmul.mubr.f32.gmra.mxu0 %v62
    %v133 = vpop.f32.mrf.mxu0
    %v134 = vadd.f32 %v53, %v133
    %v135 = vpop.f32.mrf.mxu0
    %v136 = vadd.f32 %v57, %v135
    %137 = vmatprep.mubr.f32.mxu0 0.0
    %138 = vmatmul.mubr.f32.gmra.mxu0 %v65
    %v139 = vpop.f32.mrf.mxu0
    %v140 = vadd.f32 %v53, %v139
    %v141 = vpop.f32.mrf.mxu0
    %v142 = vadd.f32 %v57, %v141
    %143 = vdwg.mxu0
    %v144 = vld [vmem:[%s2] sm:$0xff]
    %v145 = vld [vmem:[%s2 + $0x8] sm:$0xff]
    %v146 = vld [vmem:[%s2 + $0x10] sm:$0xff]
    %v147 = vld [vmem:[%s2 + $0x18] sm:$0xff]
    %v148 = vld [vmem:[%s2 + $0x20] sm:$0xff]
    %v149 = vld [vmem:[%s2 + $0x28] sm:$0xff]
    %v150 = vld [vmem:[%s2 + $0x30] sm:$0xff]
    %v151 = vld [vmem:[%s2 + $0x38] sm:$0xff]
    %v152 = vld [vmem:[%s2 + $0x40] sm:$0xff]
    %v153 = vld [vmem:[%s2 + $0x48] sm:$0xff]
    %v154 = vld [vmem:[%s2 + $0x50] sm:$0xff]
    %v155 = vld [vmem:[%s2 + $0x58] sm:$0xff]
    %v156 = vld [vmem:[%s2 + $0x60] sm:$0xff]
    %v157 = vld [vmem:[%s2 + $0x68] sm:$0xff]
    %v158 = vld [vmem:[%s2 + $0x70] sm:$0xff]
    %v159 = vld [vmem:[%s2 + $0x78] sm:$0xff]
    %v161 = vsel %vm60, 0.0, 0
    %163 = vmatprep.subr.mxu0 0.0
    %164 = vmatpush1.msra.mxu0 0.0
    %165 = vmatprep.subr.mxu0 0.0
    %166 = vmatpush1.msra.mxu0 0.0
    %167 = vmatprep.subr.mxu0 0.0
    %168 = vmatpush1.msra.mxu0 0.0
    %169 = vmatprep.subr.mxu0 0.0
    %170 = vmatpush1.msra.mxu0 0.0
    %171 = vmatprep.subr.mxu0 0.0
    %172 = vmatpush1.msra.mxu0 0.0
    %173 = vmatprep.subr.mxu0 0.0
    %174 = vmatpush1.msra.mxu0 0.0
    %175 = vmatprep.subr.mxu0 0.0
    %176 = vmatpush1.msra.mxu0 0.0
    %177 = vmatprep.subr.mxu0 0.0
    %178 = vmatpush1.msra.mxu0 0.0
    %179 = vmatprep.subr.mxu0 %v159
    %180 = vmatpush1.msra.mxu0 %v158
    %181 = vmatprep.subr.mxu0 %v157
    %182 = vmatpush1.msra.mxu0 %v156
    %183 = vmatprep.subr.mxu0 %v155
    %184 = vmatpush1.msra.mxu0 %v154
    %185 = vmatprep.subr.mxu0 %v153
    %186 = vmatpush1.msra.mxu0 %v152
    %187 = vmatprep.subr.mxu0 %v151
    %188 = vmatpush1.msra.mxu0 %v150
    %189 = vmatprep.subr.mxu0 %v149
    %190 = vmatpush1.msra.mxu0 %v148
    %191 = vmatprep.subr.mxu0 %v147
    %192 = vmatpush1.msra.mxu0 %v146
    %193 = vmatprep.subr.mxu0 %v145
    %194 = vmatpush1.msra.mxu0 %v144
    %195 = vmatprep.subr.mxu0 0.0
    %196 = vmatpush2.msra.mxu0 0.0
    %197 = vmatprep.subr.mxu0 0.0
    %198 = vmatpush2.msra.mxu0 0.0
    %199 = vmatprep.subr.mxu0 0.0
    %200 = vmatpush2.msra.mxu0 0.0
    %201 = vmatprep.subr.mxu0 0.0
    %202 = vmatpush2.msra.mxu0 0.0
    %203 = vmatprep.subr.mxu0 0.0
    %204 = vmatpush2.msra.mxu0 0.0
    %205 = vmatprep.subr.mxu0 0.0
    %206 = vmatpush2.msra.mxu0 0.0
    %207 = vmatprep.subr.mxu0 0.0
    %208 = vmatpush2.msra.mxu0 0.0
    %209 = vmatprep.subr.mxu0 0.0
    %210 = vmatpush2.msra.mxu0 0.0
    %211 = vmatprep.subr.mxu0 0.0
    %212 = vmatpush2.msra.mxu0 0.0
    %213 = vmatprep.subr.mxu0 0.0
    %214 = vmatpush2.msra.mxu0 0.0
    %215 = vmatprep.subr.mxu0 0.0
    %216 = vmatpush2.msra.mxu0 0.0
    %217 = vmatprep.subr.mxu0 0.0
    %218 = vmatpush2.msra.mxu0 0.0
    %219 = vmatprep.subr.mxu0 0.0
    %220 = vmatpush2.msra.mxu0 0.0
    %221 = vmatprep.subr.mxu0 0.0
    %222 = vmatpush2.msra.mxu0 0.0
    %223 = vmatprep.subr.mxu0 0.0
    %224 = vmatpush2.msra.mxu0 0.0
    %225 = vmatprep.subr.mxu0 0.0
    %226 = vmatpush2.msra.mxu0 0.0
    %227 = vmatprep.mubr.f32.mxu0 0.0
    %228 = vmatmul.mubr.f32.gmra.mxu0 %v161
    %v229 = vpop.f32.mrf.mxu0
    %v230 = vadd.f32 0.0, %v229
    %v231 = vpop.f32.mrf.mxu0
    %v232 = vadd.f32 0.0, %v231
    %233 = vdwg.mxu0
    %v234 = vadd.f32 %v134, %v230
    %v235 = vadd.f32 %v136, %v232
    %v236 = vxor.u32 %v234, 2147483648
    %v237 = vmul.f32 %v236, 1.442695
    %v238 = vpow.pop %v237
    %v239 = vadd.f32 %v238, 1.0
    %v240 = vrcp.pop %v239
    %v241 = vmul.f32 1.0, %v240
    %v242 = vtanh.pop %v235
    %v243 = vxor.u32 %v235, 2147483648
    %v244 = vmul.f32 %v243, 1.442695
    %v245 = vpow.pop %v244
    %v246 = vadd.f32 %v245, 1.0
    %v247 = vrcp.pop %v246
    %v248 = vmul.f32 1.0, %v247
    %v249 = vmul.f32 %v241, 0.0
    %v250 = vmul.f32 %v241, %v242
    %252 = vrot.lane.b32.xlu0 %v250, 64
    %v253 = vpop.permute.xlu0 %252
    %v255 = vadd.f32 %v249, %v253
    %v256 = vtanh.pop %v255
    %v257 = vmul.f32 %v248, %v256
    %259 = vrot.lane.b32.xlu0 %v257, 64
    %v260 = vpop.permute.xlu0 %259
    %vm262 = vcmask 254976
    %263 = vst.msk [vmem:[#allocation2] sm:$0x3] %vm262, %v260
    %vm264 = vcmask 517376
    %265 = vst.msk [vmem:[#allocation2 + $0xe] sm:$0x3] %vm264, %v260
    %v266 = vsel %vm60, %v260, 0
    %268 = vmatprep.subr.mxu0 0.0
    %269 = vmatpush1.msra.mxu0 0.0
    %270 = vmatprep.subr.mxu0 0.0
    %271 = vmatpush1.msra.mxu0 0.0
    %272 = vmatprep.subr.mxu0 0.0
    %273 = vmatpush1.msra.mxu0 0.0
    %274 = vmatprep.subr.mxu0 0.0
    %275 = vmatpush1.msra.mxu0 0.0
    %276 = vmatprep.subr.mxu0 0.0
    %277 = vmatpush1.msra.mxu0 0.0
    %278 = vmatprep.subr.mxu0 0.0
    %279 = vmatpush1.msra.mxu0 0.0
    %280 = vmatprep.subr.mxu0 0.0
    %281 = vmatpush1.msra.mxu0 0.0
    %282 = vmatprep.subr.mxu0 0.0
    %283 = vmatpush1.msra.mxu0 0.0
    %284 = vmatprep.subr.mxu0 %v159
    %285 = vmatpush1.msra.mxu0 %v158
    %286 = vmatprep.subr.mxu0 %v157
    %287 = vmatpush1.msra.mxu0 %v156
    %288 = vmatprep.subr.mxu0 %v155
    %289 = vmatpush1.msra.mxu0 %v154
    %290 = vmatprep.subr.mxu0 %v153
    %291 = vmatpush1.msra.mxu0 %v152
    %292 = vmatprep.subr.mxu0 %v151
    %293 = vmatpush1.msra.mxu0 %v150
    %294 = vmatprep.subr.mxu0 %v149
    %295 = vmatpush1.msra.mxu0 %v148
    %296 = vmatprep.subr.mxu0 %v147
    %297 = vmatpush1.msra.mxu0 %v146
    %298 = vmatprep.subr.mxu0 %v145
    %299 = vmatpush1.msra.mxu0 %v144
    %300 = vmatprep.subr.mxu0 0.0
    %301 = vmatpush2.msra.mxu0 0.0
    %302 = vmatprep.subr.mxu0 0.0
    %303 = vmatpush2.msra.mxu0 0.0
    %304 = vmatprep.subr.mxu0 0.0
    %305 = vmatpush2.msra.mxu0 0.0
    %306 = vmatprep.subr.mxu0 0.0
    %307 = vmatpush2.msra.mxu0 0.0
    %308 = vmatprep.subr.mxu0 0.0
    %309 = vmatpush2.msra.mxu0 0.0
    %310 = vmatprep.subr.mxu0 0.0
    %311 = vmatpush2.msra.mxu0 0.0
    %312 = vmatprep.subr.mxu0 0.0
    %313 = vmatpush2.msra.mxu0 0.0
    %314 = vmatprep.subr.mxu0 0.0
    %315 = vmatpush2.msra.mxu0 0.0
    %316 = vmatprep.subr.mxu0 0.0
    %317 = vmatpush2.msra.mxu0 0.0
    %318 = vmatprep.subr.mxu0 0.0
    %319 = vmatpush2.msra.mxu0 0.0
    %320 = vmatprep.subr.mxu0 0.0
    %321 = vmatpush2.msra.mxu0 0.0
    %322 = vmatprep.subr.mxu0 0.0
    %323 = vmatpush2.msra.mxu0 0.0
    %324 = vmatprep.subr.mxu0 0.0
    %325 = vmatpush2.msra.mxu0 0.0
    %326 = vmatprep.subr.mxu0 0.0
    %327 = vmatpush2.msra.mxu0 0.0
    %328 = vmatprep.subr.mxu0 0.0
    %329 = vmatpush2.msra.mxu0 0.0
    %330 = vmatprep.subr.mxu0 0.0
    %331 = vmatpush2.msra.mxu0 0.0
    %332 = vmatprep.mubr.f32.mxu0 0.0
    %333 = vmatmul.mubr.f32.gmra.mxu0 %v266
    %v334 = vpop.f32.mrf.mxu0
    %v335 = vadd.f32 0.0, %v334
    %v336 = vpop.f32.mrf.mxu0
    %v337 = vadd.f32 0.0, %v336
    %338 = vdwg.mxu0
    %v341 = vrot.slane %v335, 6
    %v342 = vrot.slane %v337, 6
    %v345 = vadd.f32 %v134, %v341
    %v346 = vadd.f32 %v136, %v342
    %v347 = vxor.u32 %v345, 2147483648
    %v348 = vmul.f32 %v347, 1.442695
    %v349 = vpow.pop %v348
    %v350 = vadd.f32 %v349, 1.0
    %v351 = vrcp.pop %v350
    %v352 = vmul.f32 1.0, %v351
    %v353 = vtanh.pop %v346
    %v354 = vxor.u32 %v346, 2147483648
    %v355 = vmul.f32 %v354, 1.442695
    %v356 = vpow.pop %v355
    %v357 = vadd.f32 %v356, 1.0
    %v358 = vrcp.pop %v357
    %v359 = vmul.f32 1.0, %v358
    %v361 = vrot.slane %v255, 6
    %v363 = vmul.f32 %v352, %v361
    %v364 = vmul.f32 %v352, %v353
    %366 = vrot.lane.b32.xlu0 %v364, 64
    %v367 = vpop.permute.xlu0 %366
    %v369 = vadd.f32 %v363, %v367
    %v370 = vtanh.pop %v369
    %v371 = vmul.f32 %v359, %v370
    %373 = vrot.lane.b32.xlu0 %v371, 64
    %v374 = vpop.permute.xlu0 %373
    %vm376 = vcmask 257026
    %377 = vst.msk [vmem:[#allocation2] sm:$0xc] %vm376, %v374
    %vm378 = vcmask 519426
    %379 = vst.msk [vmem:[#allocation2 + $0xa] sm:$0xc] %vm378, %v374
    %v380 = vrot.slane %v371, 2
    %381 = vrot.lane.b32.xlu0 %v380, 64
    %v382 = vpop.permute.xlu0 %381
    %v383 = vsel %vm60, %v382, 0
    %385 = vmatprep.subr.mxu0 0.0
    %386 = vmatpush1.msra.mxu0 0.0
    %387 = vmatprep.subr.mxu0 0.0
    %388 = vmatpush1.msra.mxu0 0.0
    %389 = vmatprep.subr.mxu0 0.0
    %390 = vmatpush1.msra.mxu0 0.0
    %391 = vmatprep.subr.mxu0 0.0
    %392 = vmatpush1.msra.mxu0 0.0
    %393 = vmatprep.subr.mxu0 0.0
    %394 = vmatpush1.msra.mxu0 0.0
    %395 = vmatprep.subr.mxu0 0.0
    %396 = vmatpush1.msra.mxu0 0.0
    %397 = vmatprep.subr.mxu0 0.0
    %398 = vmatpush1.msra.mxu0 0.0
    %399 = vmatprep.subr.mxu0 0.0
    %400 = vmatpush1.msra.mxu0 0.0
    %401 = vmatprep.subr.mxu0 %v159
    %402 = vmatpush1.msra.mxu0 %v158
    %403 = vmatprep.subr.mxu0 %v157
    %404 = vmatpush1.msra.mxu0 %v156
    %405 = vmatprep.subr.mxu0 %v155
    %406 = vmatpush1.msra.mxu0 %v154
    %407 = vmatprep.subr.mxu0 %v153
    %408 = vmatpush1.msra.mxu0 %v152
    %409 = vmatprep.subr.mxu0 %v151
    %410 = vmatpush1.msra.mxu0 %v150
    %411 = vmatprep.subr.mxu0 %v149
    %412 = vmatpush1.msra.mxu0 %v148
    %413 = vmatprep.subr.mxu0 %v147
    %414 = vmatpush1.msra.mxu0 %v146
    %415 = vmatprep.subr.mxu0 %v145
    %416 = vmatpush1.msra.mxu0 %v144
    %417 = vmatprep.subr.mxu0 0.0
    %418 = vmatpush2.msra.mxu0 0.0
    %419 = vmatprep.subr.mxu0 0.0
    %420 = vmatpush2.msra.mxu0 0.0
    %421 = vmatprep.subr.mxu0 0.0
    %422 = vmatpush2.msra.mxu0 0.0
    %423 = vmatprep.subr.mxu0 0.0
    %424 = vmatpush2.msra.mxu0 0.0
    %425 = vmatprep.subr.mxu0 0.0
    %426 = vmatpush2.msra.mxu0 0.0
    %427 = vmatprep.subr.mxu0 0.0
    %428 = vmatpush2.msra.mxu0 0.0
    %429 = vmatprep.subr.mxu0 0.0
    %430 = vmatpush2.msra.mxu0 0.0
    %431 = vmatprep.subr.mxu0 0.0
    %432 = vmatpush2.msra.mxu0 0.0
    %433 = vmatprep.subr.mxu0 0.0
    %434 = vmatpush2.msra.mxu0 0.0
    %435 = vmatprep.subr.mxu0 0.0
    %436 = vmatpush2.msra.mxu0 0.0
    %437 = vmatprep.subr.mxu0 0.0
    %438 = vmatpush2.msra.mxu0 0.0
    %439 = vmatprep.subr.mxu0 0.0
    %440 = vmatpush2.msra.mxu0 0.0
    %441 = vmatprep.subr.mxu0 0.0
    %442 = vmatpush2.msra.mxu0 0.0
    %443 = vmatprep.subr.mxu0 0.0
    %444 = vmatpush2.msra.mxu0 0.0
    %445 = vmatprep.subr.mxu0 0.0
    %446 = vmatpush2.msra.mxu0 0.0
    %447 = vmatprep.subr.mxu0 0.0
    %448 = vmatpush2.msra.mxu0 0.0
    %449 = vmatprep.mubr.f32.mxu0 0.0
    %450 = vmatmul.mubr.f32.gmra.mxu0 %v383
    %v451 = vpop.f32.mrf.mxu0
    %v452 = vadd.f32 0.0, %v451
    %v453 = vpop.f32.mrf.mxu0
    %v454 = vadd.f32 0.0, %v453
    %455 = vdwg.mxu0
    %v458 = vrot.slane %v452, 4
    %v459 = vrot.slane %v454, 4
    %v462 = vadd.f32 %v134, %v458
    %v463 = vadd.f32 %v136, %v459
    %v464 = vxor.u32 %v462, 2147483648
    %v465 = vmul.f32 %v464, 1.442695
    %v466 = vpow.pop %v465
    %v467 = vadd.f32 %v466, 1.0
    %v468 = vrcp.pop %v467
    %v469 = vmul.f32 1.0, %v468
    %v470 = vtanh.pop %v463
    %v471 = vxor.u32 %v463, 2147483648
    %v472 = vmul.f32 %v471, 1.442695
    %v473 = vpow.pop %v472
    %v474 = vadd.f32 %v473, 1.0
    %v475 = vrcp.pop %v474
    %v476 = vmul.f32 1.0, %v475
    %v478 = vrot.slane %v369, 6
    %v480 = vmul.f32 %v469, %v478
    %v481 = vmul.f32 %v469, %v470
    %483 = vrot.lane.b32.xlu0 %v481, 64
    %v484 = vpop.permute.xlu0 %483
    %v486 = vadd.f32 %v480, %v484
    %v487 = vtanh.pop %v486
    %v488 = vmul.f32 %v476, %v487
    %490 = vrot.lane.b32.xlu0 %v488, 64
    %v491 = vpop.permute.xlu0 %490
    %vm493 = vcmask 259076
    %494 = vst.msk [vmem:[#allocation2] sm:$0x30] %vm493, %v491
    %vm495 = vcmask 521476
    %496 = vst.msk [vmem:[#allocation2 + $0x6] sm:$0x30] %vm495, %v491
    %v497 = vrot.slane %v488, 4
    %498 = vrot.lane.b32.xlu0 %v497, 64
    %v499 = vpop.permute.xlu0 %498
    %v500 = vsel %vm60, %v499, 0
    %502 = vmatprep.subr.mxu0 0.0
    %503 = vmatpush1.msra.mxu0 0.0
    %504 = vmatprep.subr.mxu0 0.0
    %505 = vmatpush1.msra.mxu0 0.0
    %506 = vmatprep.subr.mxu0 0.0
    %507 = vmatpush1.msra.mxu0 0.0
    %508 = vmatprep.subr.mxu0 0.0
    %509 = vmatpush1.msra.mxu0 0.0
    %510 = vmatprep.subr.mxu0 0.0
    %511 = vmatpush1.msra.mxu0 0.0
    %512 = vmatprep.subr.mxu0 0.0
    %513 = vmatpush1.msra.mxu0 0.0
    %514 = vmatprep.subr.mxu0 0.0
    %515 = vmatpush1.msra.mxu0 0.0
    %516 = vmatprep.subr.mxu0 0.0
    %517 = vmatpush1.msra.mxu0 0.0
    %518 = vmatprep.subr.mxu0 %v159
    %519 = vmatpush1.msra.mxu0 %v158
    %520 = vmatprep.subr.mxu0 %v157
    %521 = vmatpush1.msra.mxu0 %v156
    %522 = vmatprep.subr.mxu0 %v155
    %523 = vmatpush1.msra.mxu0 %v154
    %524 = vmatprep.subr.mxu0 %v153
    %525 = vmatpush1.msra.mxu0 %v152
    %526 = vmatprep.subr.mxu0 %v151
    %527 = vmatpush1.msra.mxu0 %v150
    %528 = vmatprep.subr.mxu0 %v149
    %529 = vmatpush1.msra.mxu0 %v148
    %530 = vmatprep.subr.mxu0 %v147
    %531 = vmatpush1.msra.mxu0 %v146
    %532 = vmatprep.subr.mxu0 %v145
    %533 = vmatpush1.msra.mxu0 %v144
    %534 = vmatprep.subr.mxu0 0.0
    %535 = vmatpush2.msra.mxu0 0.0
    %536 = vmatprep.subr.mxu0 0.0
    %537 = vmatpush2.msra.mxu0 0.0
    %538 = vmatprep.subr.mxu0 0.0
    %539 = vmatpush2.msra.mxu0 0.0
    %540 = vmatprep.subr.mxu0 0.0
    %541 = vmatpush2.msra.mxu0 0.0
    %542 = vmatprep.subr.mxu0 0.0
    %543 = vmatpush2.msra.mxu0 0.0
    %544 = vmatprep.subr.mxu0 0.0
    %545 = vmatpush2.msra.mxu0 0.0
    %546 = vmatprep.subr.mxu0 0.0
    %547 = vmatpush2.msra.mxu0 0.0
    %548 = vmatprep.subr.mxu0 0.0
    %549 = vmatpush2.msra.mxu0 0.0
    %550 = vmatprep.subr.mxu0 0.0
    %551 = vmatpush2.msra.mxu0 0.0
    %552 = vmatprep.subr.mxu0 0.0
    %553 = vmatpush2.msra.mxu0 0.0
    %554 = vmatprep.subr.mxu0 0.0
    %555 = vmatpush2.msra.mxu0 0.0
    %556 = vmatprep.subr.mxu0 0.0
    %557 = vmatpush2.msra.mxu0 0.0
    %558 = vmatprep.subr.mxu0 0.0
    %559 = vmatpush2.msra.mxu0 0.0
    %560 = vmatprep.subr.mxu0 0.0
    %561 = vmatpush2.msra.mxu0 0.0
    %562 = vmatprep.subr.mxu0 0.0
    %563 = vmatpush2.msra.mxu0 0.0
    %564 = vmatprep.subr.mxu0 0.0
    %565 = vmatpush2.msra.mxu0 0.0
    %566 = vmatprep.mubr.f32.mxu0 0.0
    %567 = vmatmul.mubr.f32.gmra.mxu0 %v500
    %v568 = vpop.f32.mrf.mxu0
    %v569 = vadd.f32 0.0, %v568
    %v570 = vpop.f32.mrf.mxu0
    %v571 = vadd.f32 0.0, %v570
    %572 = vdwg.mxu0
    %v575 = vrot.slane %v569, 2
    %v576 = vrot.slane %v571, 2
    %v579 = vadd.f32 %v134, %v575
    %v580 = vadd.f32 %v136, %v576
    %v581 = vxor.u32 %v579, 2147483648
    %v582 = vmul.f32 %v581, 1.442695
    %v583 = vpow.pop %v582
    %v584 = vadd.f32 %v583, 1.0
    %v585 = vrcp.pop %v584
    %v586 = vmul.f32 1.0, %v585
    %v587 = vtanh.pop %v580
    %v588 = vxor.u32 %v580, 2147483648
    %v589 = vmul.f32 %v588, 1.442695
    %v590 = vpow.pop %v589
    %v591 = vadd.f32 %v590, 1.0
    %v592 = vrcp.pop %v591
    %v593 = vmul.f32 1.0, %v592
    %v595 = vrot.slane %v486, 6
    %v597 = vmul.f32 %v586, %v595
    %v598 = vmul.f32 %v586, %v587
    %600 = vrot.lane.b32.xlu0 %v598, 64
    %v601 = vpop.permute.xlu0 %600
    %v603 = vadd.f32 %v597, %v601
    %v604 = vtanh.pop %v603
    %v605 = vmul.f32 %v593, %v604
    %607 = vrot.lane.b32.xlu0 %v605, 64
    %v608 = vpop.permute.xlu0 %607
    %vm610 = vcmask 261126
    %611 = vst.msk [vmem:[#allocation2] sm:$0xc0] %vm610, %v608
    %vm612 = vcmask 523526
    %613 = vst.msk [vmem:[#allocation2 + $0x2] sm:$0xc0] %vm612, %v608
    %v614 = vrot.slane %v605, 6
    %615 = vrot.lane.b32.xlu0 %v614, 64
    %v616 = vpop.permute.xlu0 %615
    %v617 = vsel %vm60, %v616, 0
    %619 = vmatprep.subr.mxu0 0.0
    %620 = vmatpush1.msra.mxu0 0.0
    %621 = vmatprep.subr.mxu0 0.0
    %622 = vmatpush1.msra.mxu0 0.0
    %623 = vmatprep.subr.mxu0 0.0
    %624 = vmatpush1.msra.mxu0 0.0
    %625 = vmatprep.subr.mxu0 0.0
    %626 = vmatpush1.msra.mxu0 0.0
    %627 = vmatprep.subr.mxu0 0.0
    %628 = vmatpush1.msra.mxu0 0.0
    %629 = vmatprep.subr.mxu0 0.0
    %630 = vmatpush1.msra.mxu0 0.0
    %631 = vmatprep.subr.mxu0 0.0
    %632 = vmatpush1.msra.mxu0 0.0
    %633 = vmatprep.subr.mxu0 0.0
    %634 = vmatpush1.msra.mxu0 0.0
    %635 = vmatprep.subr.mxu0 %v159
    %636 = vmatpush1.msra.mxu0 %v158
    %637 = vmatprep.subr.mxu0 %v157
    %638 = vmatpush1.msra.mxu0 %v156
    %639 = vmatprep.subr.mxu0 %v155
    %640 = vmatpush1.msra.mxu0 %v154
    %641 = vmatprep.subr.mxu0 %v153
    %642 = vmatpush1.msra.mxu0 %v152
    %643 = vmatprep.subr.mxu0 %v151
    %644 = vmatpush1.msra.mxu0 %v150
    %645 = vmatprep.subr.mxu0 %v149
    %646 = vmatpush1.msra.mxu0 %v148
    %647 = vmatprep.subr.mxu0 %v147
    %648 = vmatpush1.msra.mxu0 %v146
    %649 = vmatprep.subr.mxu0 %v145
    %650 = vmatpush1.msra.mxu0 %v144
    %651 = vmatprep.subr.mxu0 0.0
    %652 = vmatpush2.msra.mxu0 0.0
    %653 = vmatprep.subr.mxu0 0.0
    %654 = vmatpush2.msra.mxu0 0.0
    %655 = vmatprep.subr.mxu0 0.0
    %656 = vmatpush2.msra.mxu0 0.0
    %657 = vmatprep.subr.mxu0 0.0
    %658 = vmatpush2.msra.mxu0 0.0
    %659 = vmatprep.subr.mxu0 0.0
    %660 = vmatpush2.msra.mxu0 0.0
    %661 = vmatprep.subr.mxu0 0.0
    %662 = vmatpush2.msra.mxu0 0.0
    %663 = vmatprep.subr.mxu0 0.0
    %664 = vmatpush2.msra.mxu0 0.0
    %665 = vmatprep.subr.mxu0 0.0
    %666 = vmatpush2.msra.mxu0 0.0
    %667 = vmatprep.subr.mxu0 0.0
    %668 = vmatpush2.msra.mxu0 0.0
    %669 = vmatprep.subr.mxu0 0.0
    %670 = vmatpush2.msra.mxu0 0.0
    %671 = vmatprep.subr.mxu0 0.0
    %672 = vmatpush2.msra.mxu0 0.0
    %673 = vmatprep.subr.mxu0 0.0
    %674 = vmatpush2.msra.mxu0 0.0
    %675 = vmatprep.subr.mxu0 0.0
    %676 = vmatpush2.msra.mxu0 0.0
    %677 = vmatprep.subr.mxu0 0.0
    %678 = vmatpush2.msra.mxu0 0.0
    %679 = vmatprep.subr.mxu0 0.0
    %680 = vmatpush2.msra.mxu0 0.0
    %681 = vmatprep.subr.mxu0 0.0
    %682 = vmatpush2.msra.mxu0 0.0
    %683 = vmatprep.mubr.f32.mxu0 0.0
    %684 = vmatmul.mubr.f32.gmra.mxu0 %v617
    %v685 = vpop.f32.mrf.mxu0
    %v686 = vadd.f32 0.0, %v685
    %v687 = vpop.f32.mrf.mxu0
    %v688 = vadd.f32 0.0, %v687
    %689 = vdwg.mxu0
    %v690 = vadd.f32 %v140, %v686
    %v691 = vadd.f32 %v142, %v688
    %v692 = vxor.u32 %v690, 2147483648
    %v693 = vmul.f32 %v692, 1.442695
    %v694 = vpow.pop %v693
    %v695 = vadd.f32 %v694, 1.0
    %v696 = vrcp.pop %v695
    %v697 = vmul.f32 1.0, %v696
    %v698 = vtanh.pop %v691
    %v699 = vxor.u32 %v691, 2147483648
    %v700 = vmul.f32 %v699, 1.442695
    %v701 = vpow.pop %v700
    %v702 = vadd.f32 %v701, 1.0
    %v703 = vrcp.pop %v702
    %v704 = vmul.f32 1.0, %v703
    %v706 = vrot.slane %v603, 6
    %v708 = vmul.f32 %v697, %v706
    %v709 = vmul.f32 %v697, %v698
    %711 = vrot.lane.b32.xlu0 %v709, 64
    %v712 = vpop.permute.xlu0 %711
    %v714 = vadd.f32 %v708, %v712
    %v715 = vtanh.pop %v714
    %v716 = vmul.f32 %v704, %v715
    %718 = vrot.lane.b32.xlu0 %v716, 64
    %v719 = vpop.permute.xlu0 %718
    %721 = vst.msk [vmem:[#allocation2 + $0x8] sm:$0x3] %vm262, %v719
    %722 = vst.msk [vmem:[#allocation2 + $0x6] sm:$0x3] %vm264, %v719
    %v723 = vsel %vm60, %v719, 0
    %725 = vmatprep.subr.mxu0 0.0
    %726 = vmatpush1.msra.mxu0 0.0
    %727 = vmatprep.subr.mxu0 0.0
    %728 = vmatpush1.msra.mxu0 0.0
    %729 = vmatprep.subr.mxu0 0.0
    %730 = vmatpush1.msra.mxu0 0.0
    %731 = vmatprep.subr.mxu0 0.0
    %732 = vmatpush1.msra.mxu0 0.0
    %733 = vmatprep.subr.mxu0 0.0
    %734 = vmatpush1.msra.mxu0 0.0
    %735 = vmatprep.subr.mxu0 0.0
    %736 = vmatpush1.msra.mxu0 0.0
    %737 = vmatprep.subr.mxu0 0.0
    %738 = vmatpush1.msra.mxu0 0.0
    %739 = vmatprep.subr.mxu0 0.0
    %740 = vmatpush1.msra.mxu0 0.0
    %741 = vmatprep.subr.mxu0 %v159
    %742 = vmatpush1.msra.mxu0 %v158
    %743 = vmatprep.subr.mxu0 %v157
    %744 = vmatpush1.msra.mxu0 %v156
    %745 = vmatprep.subr.mxu0 %v155
    %746 = vmatpush1.msra.mxu0 %v154
    %747 = vmatprep.subr.mxu0 %v153
    %748 = vmatpush1.msra.mxu0 %v152
    %749 = vmatprep.subr.mxu0 %v151
    %750 = vmatpush1.msra.mxu0 %v150
    %751 = vmatprep.subr.mxu0 %v149
    %752 = vmatpush1.msra.mxu0 %v148
    %753 = vmatprep.subr.mxu0 %v147
    %754 = vmatpush1.msra.mxu0 %v146
    %755 = vmatprep.subr.mxu0 %v145
    %756 = vmatpush1.msra.mxu0 %v144
    %757 = vmatprep.subr.mxu0 0.0
    %758 = vmatpush2.msra.mxu0 0.0
    %759 = vmatprep.subr.mxu0 0.0
    %760 = vmatpush2.msra.mxu0 0.0
    %761 = vmatprep.subr.mxu0 0.0
    %762 = vmatpush2.msra.mxu0 0.0
    %763 = vmatprep.subr.mxu0 0.0
    %764 = vmatpush2.msra.mxu0 0.0
    %765 = vmatprep.subr.mxu0 0.0
    %766 = vmatpush2.msra.mxu0 0.0
    %767 = vmatprep.subr.mxu0 0.0
    %768 = vmatpush2.msra.mxu0 0.0
    %769 = vmatprep.subr.mxu0 0.0
    %770 = vmatpush2.msra.mxu0 0.0
    %771 = vmatprep.subr.mxu0 0.0
    %772 = vmatpush2.msra.mxu0 0.0
    %773 = vmatprep.subr.mxu0 0.0
    %774 = vmatpush2.msra.mxu0 0.0
    %775 = vmatprep.subr.mxu0 0.0
    %776 = vmatpush2.msra.mxu0 0.0
    %777 = vmatprep.subr.mxu0 0.0
    %778 = vmatpush2.msra.mxu0 0.0
    %779 = vmatprep.subr.mxu0 0.0
    %780 = vmatpush2.msra.mxu0 0.0
    %781 = vmatprep.subr.mxu0 0.0
    %782 = vmatpush2.msra.mxu0 0.0
    %783 = vmatprep.subr.mxu0 0.0
    %784 = vmatpush2.msra.mxu0 0.0
    %785 = vmatprep.subr.mxu0 0.0
    %786 = vmatpush2.msra.mxu0 0.0
    %787 = vmatprep.subr.mxu0 0.0
    %788 = vmatpush2.msra.mxu0 0.0
    %789 = vmatprep.mubr.f32.mxu0 0.0
    %790 = vmatmul.mubr.f32.gmra.mxu0 %v723
    %v791 = vpop.f32.mrf.mxu0
    %v792 = vadd.f32 0.0, %v791
    %v793 = vpop.f32.mrf.mxu0
    %v794 = vadd.f32 0.0, %v793
    %795 = vdwg.mxu0
    %v798 = vrot.slane %v792, 6
    %v799 = vrot.slane %v794, 6
    %v802 = vadd.f32 %v140, %v798
    %v803 = vadd.f32 %v142, %v799
    %v804 = vxor.u32 %v802, 2147483648
    %v805 = vmul.f32 %v804, 1.442695
    %v806 = vpow.pop %v805
    %v807 = vadd.f32 %v806, 1.0
    %v808 = vrcp.pop %v807
    %v809 = vmul.f32 1.0, %v808
    %v810 = vtanh.pop %v803
    %v811 = vxor.u32 %v803, 2147483648
    %v812 = vmul.f32 %v811, 1.442695
    %v813 = vpow.pop %v812
    %v814 = vadd.f32 %v813, 1.0
    %v815 = vrcp.pop %v814
    %v816 = vmul.f32 1.0, %v815
    %v818 = vrot.slane %v714, 6
    %v820 = vmul.f32 %v809, %v818
    %v821 = vmul.f32 %v809, %v810
    %823 = vrot.lane.b32.xlu0 %v821, 64
    %v824 = vpop.permute.xlu0 %823
    %v826 = vadd.f32 %v820, %v824
    %v827 = vtanh.pop %v826
    %v828 = vmul.f32 %v816, %v827
    %830 = vrot.lane.b32.xlu0 %v828, 64
    %v831 = vpop.permute.xlu0 %830
    %833 = vst.msk [vmem:[#allocation2 + $0x8] sm:$0xc] %vm376, %v831
    %834 = vst.msk [vmem:[#allocation2 + $0x2] sm:$0xc] %vm378, %v831
    %v835 = vrot.slane %v828, 2
    %836 = vrot.lane.b32.xlu0 %v835, 64
    %v837 = vpop.permute.xlu0 %836
    %v838 = vsel %vm60, %v837, 0
    %840 = vmatprep.subr.mxu0 0.0
    %841 = vmatpush1.msra.mxu0 0.0
    %842 = vmatprep.subr.mxu0 0.0
    %843 = vmatpush1.msra.mxu0 0.0
    %844 = vmatprep.subr.mxu0 0.0
    %845 = vmatpush1.msra.mxu0 0.0
    %846 = vmatprep.subr.mxu0 0.0
    %847 = vmatpush1.msra.mxu0 0.0
    %848 = vmatprep.subr.mxu0 0.0
    %849 = vmatpush1.msra.mxu0 0.0
    %850 = vmatprep.subr.mxu0 0.0
    %851 = vmatpush1.msra.mxu0 0.0
    %852 = vmatprep.subr.mxu0 0.0
    %853 = vmatpush1.msra.mxu0 0.0
    %854 = vmatprep.subr.mxu0 0.0
    %855 = vmatpush1.msra.mxu0 0.0
    %856 = vmatprep.subr.mxu0 %v159
    %857 = vmatpush1.msra.mxu0 %v158
    %858 = vmatprep.subr.mxu0 %v157
    %859 = vmatpush1.msra.mxu0 %v156
    %860 = vmatprep.subr.mxu0 %v155
    %861 = vmatpush1.msra.mxu0 %v154
    %862 = vmatprep.subr.mxu0 %v153
    %863 = vmatpush1.msra.mxu0 %v152
    %864 = vmatprep.subr.mxu0 %v151
    %865 = vmatpush1.msra.mxu0 %v150
    %866 = vmatprep.subr.mxu0 %v149
    %867 = vmatpush1.msra.mxu0 %v148
    %868 = vmatprep.subr.mxu0 %v147
    %869 = vmatpush1.msra.mxu0 %v146
    %870 = vmatprep.subr.mxu0 %v145
    %871 = vmatpush1.msra.mxu0 %v144
    %872 = vmatprep.subr.mxu0 0.0
    %873 = vmatpush2.msra.mxu0 0.0
    %874 = vmatprep.subr.mxu0 0.0
    %875 = vmatpush2.msra.mxu0 0.0
    %876 = vmatprep.subr.mxu0 0.0
    %877 = vmatpush2.msra.mxu0 0.0
    %878 = vmatprep.subr.mxu0 0.0
    %879 = vmatpush2.msra.mxu0 0.0
    %880 = vmatprep.subr.mxu0 0.0
    %881 = vmatpush2.msra.mxu0 0.0
    %882 = vmatprep.subr.mxu0 0.0
    %883 = vmatpush2.msra.mxu0 0.0
    %884 = vmatprep.subr.mxu0 0.0
    %885 = vmatpush2.msra.mxu0 0.0
    %886 = vmatprep.subr.mxu0 0.0
    %887 = vmatpush2.msra.mxu0 0.0
    %888 = vmatprep.subr.mxu0 0.0
    %889 = vmatpush2.msra.mxu0 0.0
    %890 = vmatprep.subr.mxu0 0.0
    %891 = vmatpush2.msra.mxu0 0.0
    %892 = vmatprep.subr.mxu0 0.0
    %893 = vmatpush2.msra.mxu0 0.0
    %894 = vmatprep.subr.mxu0 0.0
    %895 = vmatpush2.msra.mxu0 0.0
    %896 = vmatprep.subr.mxu0 0.0
    %897 = vmatpush2.msra.mxu0 0.0
    %898 = vmatprep.subr.mxu0 0.0
    %899 = vmatpush2.msra.mxu0 0.0
    %900 = vmatprep.subr.mxu0 0.0
    %901 = vmatpush2.msra.mxu0 0.0
    %902 = vmatprep.subr.mxu0 0.0
    %903 = vmatpush2.msra.mxu0 0.0
    %904 = vmatprep.mubr.f32.mxu0 0.0
    %905 = vmatmul.mubr.f32.gmra.mxu0 %v838
    %v906 = vpop.f32.mrf.mxu0
    %v907 = vadd.f32 0.0, %v906
    %v908 = vpop.f32.mrf.mxu0
    %v909 = vadd.f32 0.0, %v908
    %910 = vdwg.mxu0
    %v913 = vrot.slane %v907, 4
    %v914 = vrot.slane %v909, 4
    %v917 = vadd.f32 %v140, %v913
    %v918 = vadd.f32 %v142, %v914
    %v919 = vxor.u32 %v917, 2147483648
    %v920 = vmul.f32 %v919, 1.442695
    %v921 = vpow.pop %v920
    %v922 = vadd.f32 %v921, 1.0
    %v923 = vrcp.pop %v922
    %v924 = vmul.f32 1.0, %v923
    %v925 = vtanh.pop %v918
    %v926 = vxor.u32 %v918, 2147483648
    %v927 = vmul.f32 %v926, 1.442695
    %v928 = vpow.pop %v927
    %v929 = vadd.f32 %v928, 1.0
    %v930 = vrcp.pop %v929
    %v931 = vmul.f32 1.0, %v930
    %v933 = vrot.slane %v826, 6
    %v935 = vmul.f32 %v924, %v933
    %v936 = vmul.f32 %v924, %v925
    %938 = vrot.lane.b32.xlu0 %v936, 64
    %v939 = vpop.permute.xlu0 %938
    %v941 = vadd.f32 %v935, %v939
    %v942 = vtanh.pop %v941
    %v943 = vmul.f32 %v931, %v942
    %945 = vrot.lane.b32.xlu0 %v943, 64
    %v946 = vpop.permute.xlu0 %945
    %948 = vst.msk [vmem:[#allocation2 + $0x8] sm:$0x30] %vm493, %v946
    %949 = vst.msk [vmem:[#allocation2 - $0x2] sm:$0x30] %vm495, %v946
    %v950 = vrot.slane %v943, 4
    %951 = vrot.lane.b32.xlu0 %v950, 64
    %v952 = vpop.permute.xlu0 %951
    %v953 = vsel %vm60, %v952, 0
    %955 = vmatprep.subr.mxu0 0.0
    %956 = vmatpush1.msra.mxu0 0.0
    %957 = vmatprep.subr.mxu0 0.0
    %958 = vmatpush1.msra.mxu0 0.0
    %959 = vmatprep.subr.mxu0 0.0
    %960 = vmatpush1.msra.mxu0 0.0
    %961 = vmatprep.subr.mxu0 0.0
    %962 = vmatpush1.msra.mxu0 0.0
    %963 = vmatprep.subr.mxu0 0.0
    %964 = vmatpush1.msra.mxu0 0.0
    %965 = vmatprep.subr.mxu0 0.0
    %966 = vmatpush1.msra.mxu0 0.0
    %967 = vmatprep.subr.mxu0 0.0
    %968 = vmatpush1.msra.mxu0 0.0
    %969 = vmatprep.subr.mxu0 0.0
    %970 = vmatpush1.msra.mxu0 0.0
    %971 = vmatprep.subr.mxu0 %v159
    %972 = vmatpush1.msra.mxu0 %v158
    %973 = vmatprep.subr.mxu0 %v157
    %974 = vmatpush1.msra.mxu0 %v156
    %975 = vmatprep.subr.mxu0 %v155
    %976 = vmatpush1.msra.mxu0 %v154
    %977 = vmatprep.subr.mxu0 %v153
    %978 = vmatpush1.msra.mxu0 %v152
    %979 = vmatprep.subr.mxu0 %v151
    %980 = vmatpush1.msra.mxu0 %v150
    %981 = vmatprep.subr.mxu0 %v149
    %982 = vmatpush1.msra.mxu0 %v148
    %983 = vmatprep.subr.mxu0 %v147
    %984 = vmatpush1.msra.mxu0 %v146
    %985 = vmatprep.subr.mxu0 %v145
    %986 = vmatpush1.msra.mxu0 %v144
    %987 = vmatprep.subr.mxu0 0.0
    %988 = vmatpush2.msra.mxu0 0.0
    %989 = vmatprep.subr.mxu0 0.0
    %990 = vmatpush2.msra.mxu0 0.0
    %991 = vmatprep.subr.mxu0 0.0
    %992 = vmatpush2.msra.mxu0 0.0
    %993 = vmatprep.subr.mxu0 0.0
    %994 = vmatpush2.msra.mxu0 0.0
    %995 = vmatprep.subr.mxu0 0.0
    %996 = vmatpush2.msra.mxu0 0.0
    %997 = vmatprep.subr.mxu0 0.0
    %998 = vmatpush2.msra.mxu0 0.0
    %999 = vmatprep.subr.mxu0 0.0
    %1000 = vmatpush2.msra.mxu0 0.0
    %1001 = vmatprep.subr.mxu0 0.0
    %1002 = vmatpush2.msra.mxu0 0.0
    %1003 = vmatprep.subr.mxu0 0.0
    %1004 = vmatpush2.msra.mxu0 0.0
    %1005 = vmatprep.subr.mxu0 0.0
    %1006 = vmatpush2.msra.mxu0 0.0
    %1007 = vmatprep.subr.mxu0 0.0
    %1008 = vmatpush2.msra.mxu0 0.0
    %1009 = vmatprep.subr.mxu0 0.0
    %1010 = vmatpush2.msra.mxu0 0.0
    %1011 = vmatprep.subr.mxu0 0.0
    %1012 = vmatpush2.msra.mxu0 0.0
    %1013 = vmatprep.subr.mxu0 0.0
    %1014 = vmatpush2.msra.mxu0 0.0
    %1015 = vmatprep.subr.mxu0 0.0
    %1016 = vmatpush2.msra.mxu0 0.0
    %1017 = vmatprep.subr.mxu0 0.0
    %1018 = vmatpush2.msra.mxu0 0.0
    %1019 = vmatprep.mubr.f32.mxu0 0.0
    %1020 = vmatmul.mubr.f32.gmra.mxu0 %v953
    %v1021 = vpop.f32.mrf.mxu0
    %v1022 = vadd.f32 0.0, %v1021
    %v1023 = vpop.f32.mrf.mxu0
    %v1024 = vadd.f32 0.0, %v1023
    %1025 = vdwg.mxu0
    %v1028 = vrot.slane %v1022, 2
    %v1029 = vrot.slane %v1024, 2
    %v1032 = vadd.f32 %v140, %v1028
    %v1033 = vadd.f32 %v142, %v1029
    %v1034 = vxor.u32 %v1032, 2147483648
    %v1035 = vmul.f32 %v1034, 1.442695
    %v1036 = vpow.pop %v1035
    %v1037 = vadd.f32 %v1036, 1.0
    %v1038 = vrcp.pop %v1037
    %v1039 = vmul.f32 1.0, %v1038
    %v1040 = vtanh.pop %v1033
    %v1041 = vxor.u32 %v1033, 2147483648
    %v1042 = vmul.f32 %v1041, 1.442695
    %v1043 = vpow.pop %v1042
    %v1044 = vadd.f32 %v1043, 1.0
    %v1045 = vrcp.pop %v1044
    %v1046 = vmul.f32 1.0, %v1045
    %v1048 = vrot.slane %v941, 6
    %v1050 = vmul.f32 %v1039, %v1048
    %v1051 = vmul.f32 %v1039, %v1040
    %1053 = vrot.lane.b32.xlu0 %v1051, 64
    %v1054 = vpop.permute.xlu0 %1053
    %v1056 = vadd.f32 %v1050, %v1054
    %v1057 = vtanh.pop %v1056
    %v1058 = vmul.f32 %v1046, %v1057
    %1060 = vrot.lane.b32.xlu0 %v1058, 64
    %v1061 = vpop.permute.xlu0 %1060
    %1063 = vst.msk [vmem:[#allocation2 + $0x8] sm:$0xc0] %vm610, %v1061
    %1064 = vst.msk [vmem:[#allocation2 - $0x6] sm:$0xc0] %vm612, %v1061
    %v1065 = vld [vmem:[#allocation2] sm:$0xff]
    %v1066 = vld [vmem:[#allocation2 + $0x8] sm:$0xff]
    %v1067 = vld [vmem:[%s4] sm:$0xff]
    %v1068 = vld [vmem:[%s4 + $0x8] sm:$0xff]
    %v1069 = vld [vmem:[%s4 + $0x10] sm:$0xff]
    %v1070 = vld [vmem:[%s4 + $0x18] sm:$0xff]
    %v1071 = vld [vmem:[%s4 + $0x20] sm:$0xff]
    %v1072 = vld [vmem:[%s4 + $0x28] sm:$0xff]
    %v1073 = vld [vmem:[%s4 + $0x30] sm:$0xff]
    %v1074 = vld [vmem:[%s4 + $0x38] sm:$0xff]
    %v1075 = vld [vmem:[%s5] sm:$0x1]
    %v1077 = vlaneseq
    %v1078 = vshrl.u32 %v1077, 7
    %v1079 = vsub.s32 0, %v1078
    %v1080 = vrot.slane %v1075, %v1079
    %v1083 = vsel %vm60, %v1065, 0
    %v1086 = vsel %vm60, %v1066, 0
    %1088 = vmatprep.subr.mxu0 0.0
    %1089 = vmatpush1.msra.mxu0 0.0
    %1090 = vmatprep.subr.mxu0 0.0
    %1091 = vmatpush1.msra.mxu0 0.0
    %1092 = vmatprep.subr.mxu0 0.0
    %1093 = vmatpush1.msra.mxu0 0.0
    %1094 = vmatprep.subr.mxu0 0.0
    %1095 = vmatpush1.msra.mxu0 0.0
    %1096 = vmatprep.subr.mxu0 0.0
    %1097 = vmatpush1.msra.mxu0 0.0
    %1098 = vmatprep.subr.mxu0 0.0
    %1099 = vmatpush1.msra.mxu0 0.0
    %1100 = vmatprep.subr.mxu0 0.0
    %1101 = vmatpush1.msra.mxu0 0.0
    %1102 = vmatprep.subr.mxu0 0.0
    %1103 = vmatpush1.msra.mxu0 0.0
    %1104 = vmatprep.subr.mxu0 0.0
    %1105 = vmatpush1.msra.mxu0 %v1074
    %1106 = vmatprep.subr.mxu0 0.0
    %1107 = vmatpush1.msra.mxu0 %v1073
    %1108 = vmatprep.subr.mxu0 0.0
    %1109 = vmatpush1.msra.mxu0 %v1072
    %1110 = vmatprep.subr.mxu0 0.0
    %1111 = vmatpush1.msra.mxu0 %v1071
    %1112 = vmatprep.subr.mxu0 0.0
    %1113 = vmatpush1.msra.mxu0 %v1070
    %1114 = vmatprep.subr.mxu0 0.0
    %1115 = vmatpush1.msra.mxu0 %v1069
    %1116 = vmatprep.subr.mxu0 0.0
    %1117 = vmatpush1.msra.mxu0 %v1068
    %1118 = vmatprep.subr.mxu0 0.0
    %1119 = vmatpush1.msra.mxu0 %v1067
    %1120 = vmatprep.subr.mxu0 0.0
    %1121 = vmatpush2.msra.mxu0 0.0
    %1122 = vmatprep.subr.mxu0 0.0
    %1123 = vmatpush2.msra.mxu0 0.0
    %1124 = vmatprep.subr.mxu0 0.0
    %1125 = vmatpush2.msra.mxu0 0.0
    %1126 = vmatprep.subr.mxu0 0.0
    %1127 = vmatpush2.msra.mxu0 0.0
    %1128 = vmatprep.subr.mxu0 0.0
    %1129 = vmatpush2.msra.mxu0 0.0
    %1130 = vmatprep.subr.mxu0 0.0
    %1131 = vmatpush2.msra.mxu0 0.0
    %1132 = vmatprep.subr.mxu0 0.0
    %1133 = vmatpush2.msra.mxu0 0.0
    %1134 = vmatprep.subr.mxu0 0.0
    %1135 = vmatpush2.msra.mxu0 0.0
    %1136 = vmatprep.subr.mxu0 0.0
    %1137 = vmatpush2.msra.mxu0 0.0
    %1138 = vmatprep.subr.mxu0 0.0
    %1139 = vmatpush2.msra.mxu0 0.0
    %1140 = vmatprep.subr.mxu0 0.0
    %1141 = vmatpush2.msra.mxu0 0.0
    %1142 = vmatprep.subr.mxu0 0.0
    %1143 = vmatpush2.msra.mxu0 0.0
    %1144 = vmatprep.subr.mxu0 0.0
    %1145 = vmatpush2.msra.mxu0 0.0
    %1146 = vmatprep.subr.mxu0 0.0
    %1147 = vmatpush2.msra.mxu0 0.0
    %1148 = vmatprep.subr.mxu0 0.0
    %1149 = vmatpush2.msra.mxu0 0.0
    %1150 = vmatprep.subr.mxu0 0.0
    %1151 = vmatpush2.msra.mxu0 0.0
    %1152 = vmatprep.mubr.f32.mxu0 0.0
    %1153 = vmatmul.mubr.f32.gmra.mxu0 %v1083
    %v1154 = vpop.f32.mrf.mxu0
    %v1155 = vadd.f32 %v1080, %v1154
    %v1156 = vpop.f32.mrf.mxu0
    %1157 = vmatprep.mubr.f32.mxu0 0.0
    %1158 = vmatmul.mubr.f32.gmra.mxu0 %v1086
    %v1159 = vpop.f32.mrf.mxu0
    %v1160 = vadd.f32 %v1080, %v1159
    %v1161 = vpop.f32.mrf.mxu0
    %1162 = vdwg.mxu0
    %v1163 = vtanh.pop %v1155
    %v1164 = vtanh.pop %v1160
    %v1165 = vld [vmem:[%s6] sm:$0x1]
    %v1167 = vlaneseq
    %v1168 = vshrl.u32 %v1167, 7
    %v1169 = vsub.s32 0, %v1168
    %v1170 = vrot.slane %v1165, %v1169
    %v1172 = vmul.f32 %v1163, %v1170
    %v1173 = vmul.f32 %v1164, %v1170
    %v1174 = vsel %vm60, %v1172, 0.0
    %1175 = vadd.xlane.f32.xlu0 %v1174
    %v1176 = vpop.xlane.xlu0 %1175
    %v1177 = vsel %vm60, %v1173, 0.0
    %1178 = vadd.xlane.f32.xlu0 %v1177
    %v1179 = vpop.xlane.xlu0 %1178
    %v1180 = vmax.f32 %v1176, %v1179
    %v1181 = vrot.slane %v1180, 4
    %v1182 = vmax.f32 %v1180, %v1181
    %v1183 = vrot.slane %v1182, 2
    %v1184 = vmax.f32 %v1182, %v1183
    %v1185 = vrot.slane %v1184, 1
    %v1186 = vmax.f32 %v1184, %v1185
    %s1187 = vtos %v1186
    %v1188 = vstv %s1187
    %v1189 = vsub.f32 %v1176, %v1188
    %v1190 = vsub.f32 %v1179, %v1188
    %v1191 = vmul.f32 %v1189, 1.442695
    %v1192 = vpow.pop %v1191
    %v1193 = vmul.f32 %v1190, 1.442695
    %v1194 = vpow.pop %v1193
    %v1195 = vld [vmem:[%s7] sm:$0x3]
    %v1196 = vmul.f32 %v1192, %v1065
    %v1197 = vmul.f32 %v1194, %v1066
    %vm1198 = vcmask 130048
    %v1200 = vsel %vm1198, %v1195, 0
    %1202 = vmatprep.subr.mxu0 0.0
    %1203 = vmatpush1.msra.mxu0 0.0
    %1204 = vmatprep.subr.mxu0 0.0
    %1205 = vmatpush1.msra.mxu0 0.0
    %1206 = vmatprep.subr.mxu0 0.0
    %1207 = vmatpush1.msra.mxu0 0.0
    %1208 = vmatprep.subr.mxu0 0.0
    %1209 = vmatpush1.msra.mxu0 0.0
    %1210 = vmatprep.subr.mxu0 0.0
    %1211 = vmatpush1.msra.mxu0 0.0
    %1212 = vmatprep.subr.mxu0 0.0
    %1213 = vmatpush1.msra.mxu0 0.0
    %1214 = vmatprep.subr.mxu0 0.0
    %1215 = vmatpush1.msra.mxu0 0.0
    %1216 = vmatprep.subr.mxu0 0.0
    %1217 = vmatpush1.msra.mxu0 0.0
    %1218 = vmatprep.subr.mxu0 0.0
    %1219 = vmatpush1.msra.mxu0 0.0
    %1220 = vmatprep.subr.mxu0 0.0
    %1221 = vmatpush1.msra.mxu0 0.0
    %1222 = vmatprep.subr.mxu0 0.0
    %1223 = vmatpush1.msra.mxu0 0.0
    %1224 = vmatprep.subr.mxu0 0.0
    %1225 = vmatpush1.msra.mxu0 0.0
    %1226 = vmatprep.subr.mxu0 0.0
    %1227 = vmatpush1.msra.mxu0 0.0
    %1228 = vmatprep.subr.mxu0 0.0
    %1229 = vmatpush1.msra.mxu0 0.0
    %1230 = vmatprep.subr.mxu0 0.0
    %1231 = vmatpush1.msra.mxu0 %v1197
    %1232 = vmatprep.subr.mxu0 0.0
    %1233 = vmatpush1.msra.mxu0 %v1196
    %1234 = vmatprep.subr.mxu0 0.0
    %1235 = vmatpush2.msra.mxu0 0.0
    %1236 = vmatprep.subr.mxu0 0.0
    %1237 = vmatpush2.msra.mxu0 0.0
    %1238 = vmatprep.subr.mxu0 0.0
    %1239 = vmatpush2.msra.mxu0 0.0
    %1240 = vmatprep.subr.mxu0 0.0
    %1241 = vmatpush2.msra.mxu0 0.0
    %1242 = vmatprep.subr.mxu0 0.0
    %1243 = vmatpush2.msra.mxu0 0.0
    %1244 = vmatprep.subr.mxu0 0.0
    %1245 = vmatpush2.msra.mxu0 0.0
    %1246 = vmatprep.subr.mxu0 0.0
    %1247 = vmatpush2.msra.mxu0 0.0
    %1248 = vmatprep.subr.mxu0 0.0
    %1249 = vmatpush2.msra.mxu0 0.0
    %1250 = vmatprep.subr.mxu0 0.0
    %1251 = vmatpush2.msra.mxu0 0.0
    %1252 = vmatprep.subr.mxu0 0.0
    %1253 = vmatpush2.msra.mxu0 0.0
    %1254 = vmatprep.subr.mxu0 0.0
    %1255 = vmatpush2.msra.mxu0 0.0
    %1256 = vmatprep.subr.mxu0 0.0
    %1257 = vmatpush2.msra.mxu0 0.0
    %1258 = vmatprep.subr.mxu0 0.0
    %1259 = vmatpush2.msra.mxu0 0.0
    %1260 = vmatprep.subr.mxu0 0.0
    %1261 = vmatpush2.msra.mxu0 0.0
    %1262 = vmatprep.subr.mxu0 0.0
    %1263 = vmatpush2.msra.mxu0 0.0
    %1264 = vmatprep.subr.mxu0 0.0
    %1265 = vmatpush2.msra.mxu0 0.0
    %1266 = vmatprep.mubr.f32.mxu0 0.0
    %1267 = vmatmul.mubr.f32.gmra.mxu0 %v1200
    %v1268 = vpop.f32.mrf.mxu0
    %v1269 = vadd.f32 0.0, %v1268
    %v1270 = vpop.f32.mrf.mxu0
    %1271 = vdwg.mxu0
    %1272 = vmatprep.subr.mxu0 0.0
    %1273 = vmatpush1.msra.mxu0 0.0
    %1274 = vmatprep.subr.mxu0 0.0
    %1275 = vmatpush1.msra.mxu0 0.0
    %1276 = vmatprep.subr.mxu0 0.0
    %1277 = vmatpush1.msra.mxu0 0.0
    %1278 = vmatprep.subr.mxu0 0.0
    %1279 = vmatpush1.msra.mxu0 0.0
    %1280 = vmatprep.subr.mxu0 0.0
    %1281 = vmatpush1.msra.mxu0 0.0
    %1282 = vmatprep.subr.mxu0 0.0
    %1283 = vmatpush1.msra.mxu0 0.0
    %1284 = vmatprep.subr.mxu0 0.0
    %1285 = vmatpush1.msra.mxu0 0.0
    %1286 = vmatprep.subr.mxu0 0.0
    %1287 = vmatpush1.msra.mxu0 0.0
    %1288 = vmatprep.subr.mxu0 0.0
    %1289 = vmatpush1.msra.mxu0 0.0
    %1290 = vmatprep.subr.mxu0 0.0
    %1291 = vmatpush1.msra.mxu0 0.0
    %1292 = vmatprep.subr.mxu0 0.0
    %1293 = vmatpush1.msra.mxu0 0.0
    %1294 = vmatprep.subr.mxu0 0.0
    %1295 = vmatpush1.msra.mxu0 0.0
    %1296 = vmatprep.subr.mxu0 0.0
    %1297 = vmatpush1.msra.mxu0 0.0
    %1298 = vmatprep.subr.mxu0 0.0
    %1299 = vmatpush1.msra.mxu0 0.0
    %1300 = vmatprep.subr.mxu0 0.0
    %1301 = vmatpush1.msra.mxu0 %v1194
    %1302 = vmatprep.subr.mxu0 0.0
    %1303 = vmatpush1.msra.mxu0 %v1192
    %1304 = vmatprep.subr.mxu0 0.0
    %1305 = vmatpush2.msra.mxu0 0.0
    %1306 = vmatprep.subr.mxu0 0.0
    %1307 = vmatpush2.msra.mxu0 0.0
    %1308 = vmatprep.subr.mxu0 0.0
    %1309 = vmatpush2.msra.mxu0 0.0
    %1310 = vmatprep.subr.mxu0 0.0
    %1311 = vmatpush2.msra.mxu0 0.0
    %1312 = vmatprep.subr.mxu0 0.0
    %1313 = vmatpush2.msra.mxu0 0.0
    %1314 = vmatprep.subr.mxu0 0.0
    %1315 = vmatpush2.msra.mxu0 0.0
    %1316 = vmatprep.subr.mxu0 0.0
    %1317 = vmatpush2.msra.mxu0 0.0
    %1318 = vmatprep.subr.mxu0 0.0
    %1319 = vmatpush2.msra.mxu0 0.0
    %1320 = vmatprep.subr.mxu0 0.0
    %1321 = vmatpush2.msra.mxu0 0.0
    %1322 = vmatprep.subr.mxu0 0.0
    %1323 = vmatpush2.msra.mxu0 0.0
    %1324 = vmatprep.subr.mxu0 0.0
    %1325 = vmatpush2.msra.mxu0 0.0
    %1326 = vmatprep.subr.mxu0 0.0
    %1327 = vmatpush2.msra.mxu0 0.0
    %1328 = vmatprep.subr.mxu0 0.0
    %1329 = vmatpush2.msra.mxu0 0.0
    %1330 = vmatprep.subr.mxu0 0.0
    %1331 = vmatpush2.msra.mxu0 0.0
    %1332 = vmatprep.subr.mxu0 0.0
    %1333 = vmatpush2.msra.mxu0 0.0
    %1334 = vmatprep.subr.mxu0 0.0
    %1335 = vmatpush2.msra.mxu0 0.0
    %1336 = vmatprep.mubr.f32.mxu0 0.0
    %1337 = vmatmul.mubr.f32.gmra.mxu0 %v1200
    %v1338 = vpop.f32.mrf.mxu0
    %v1339 = vadd.f32 0.0, %v1338
    %v1340 = vpop.f32.mrf.mxu0
    %1341 = vdwg.mxu0
    %v1342 = vrcp.pop %v1339
    %1344 = vset.pattern.permute.xlu0 0
    %1345 = vperm.xlu0 %1344, %v1342
    %v1346 = vpop.permute.xlu0 %1345
    %v1348 = vmul.f32 %v1269, %v1346
    %v1351 = vunpack.c.l.s4 1966171168
    %v1352 = vunpack.c.0.s8 %v1351
    %v1353 = vlaneseq
    %v1354 = vshrl.u32 %v1353, 7
    %v1355 = vsub.s32 %v1352, %v1354
    %v1356 = vrot.slane %v1348, %v1355
    %v1357 = vcombine.high %v1356, %v1356
    %v1359 = vunpack.c.l.s4 1966171168
    %v1360 = vunpack.c.0.s8 %v1359
    %v1361 = vlaneseq
    %v1362 = vshrl.u32 %v1361, 7
    %v1363 = vsub.s32 %v1360, %v1362
    %v1364 = vrot.slane %v1356, %v1363
    %v1366 = vunpack.c.l.s4 1966171168
    %v1367 = vunpack.c.0.s8 %v1366
    %v1368 = vlaneseq
    %v1369 = vshrl.u32 %v1368, 7
    %v1370 = vsub.s32 %v1367, %v1369
    %v1371 = vrot.slane %v1357, %v1370
    %vm1374 = vcmask 516096
    %1375 = vst.msk [vmem:[#allocation3] sm:$0x1] %vm1374, %v1364
    %1376 = vst.msk [vmem:[#allocation3 + $0x1] sm:$0x1] %vm1374, %v1371
    // Predicated region
    $region34: #{specific_forward.1} parent=1 // pred_check
      _
    $region35: #{specific_forward.1} parent=1 // pred_check_branch
      %1378 = sbr.rel (0) target = $region37
    $region36: #{specific_forward.1} parent=1 // pred_region
      %s1380 = ssub.s32 32, 32
      %1381 = vsyncadd [#allocation4], %s1380
      %s1382 = sshll.u32 [#allocation3], 4
      %s1383 = int_to_ptr.vmem [resolvable:$true] %s1382
      %1388 = dma.vmem_to_hbm [thread:$0]  %s1383, 32, %s8, [#allocation4], 16, 16, 1
    $region37: #{specific_forward.1} parent=1 // pred_fallthru
      _
    // Predicated region
    $region38: #{specific_forward.1} parent=1 // pred_check
      _
    $region39: #{specific_forward.1} parent=1 // pred_check_branch
      %1390 = sbr.rel (0) target = $region41
    $region40: #{specific_forward.1} parent=1 // pred_region
      %1391 = dma.done [#allocation4], 32
    $region41: #{specific_forward.1} parent=1 // pred_fallthru
      _
    %1392 = vsyncpa [#allocation4], 1

</llo_original>
